<compile_context>
chip_gen: v7x
topology: tpu7x:2x2x1
jax: 0.10.0
libtpu: 0.0.40
codegen_flags: <defaults>
</compile_context>

<pallas_src>
import jax
import jax.numpy as jnp
from jax import lax
from jax.experimental import pallas as pl
from jax.experimental.pallas import tpu as pltpu


_N_FEAT_IN = 7
_SLAB_ROWS = 96
_LANES = 128

# Row offsets inside the packed weight slab.
_ROW_W1, _ROW_B1 = 0, 7        # sage1  (7,14) / (1,14)
_ROW_WZ1, _ROW_BZ1 = 8, 22     # pool1  [we1|wa1] (14,28) / (1,28)
_ROW_W2, _ROW_B2 = 23, 37      # sage2  (14,28) / (1,28)
_ROW_WZ2, _ROW_BZ2 = 38, 66    # pool2  [we2|wa2] (28,29) / (1,29)
_ROW_WH, _ROW_BH = 67, 95      # folded head (28,2) / (1,2)

_CONTRACT0 = (((0,), (0,)), ((), ()))   # contract over axis 0 of both operands (== lhs.T @ rhs)


# ----------------------------- kernel-side helpers -----------------------------

def _norm_relu(h):
    """L2-normalize rows (F.normalize, eps=1e-12) then relu."""
    ss = jnp.sum(h * h, axis=-1, keepdims=True)
    h = h * lax.rsqrt(jnp.maximum(ss, 1e-24))       # == h / max(||h||, 1e-12)
    return jnp.maximum(h, 0.0)


def _softmax(z):
    m = jnp.max(z, axis=-1, keepdims=True)
    e = jnp.exp(z - m)
    return e / jnp.sum(e, axis=-1, keepdims=True)   # exact divide (keeps 1e-4 tolerance)


# --------------------------------- the kernel ----------------------------------

def classifier_kernel(x_ref, a_ref, w_ref, out_ref):
    f32 = jnp.float32
    x = x_ref[...]                                   # (N, 7)
    a = a_ref[...]                                   # (N, N)

    # --- unpack weights from the single packed VMEM slab (static slices) ---
    w1  = w_ref[_ROW_W1:_ROW_W1 + 7,    0:14]
    b1  = w_ref[_ROW_B1:_ROW_B1 + 1,    0:14]
    wz1 = w_ref[_ROW_WZ1:_ROW_WZ1 + 14, 0:28]        # [we1 | wa1]
    bz1 = w_ref[_ROW_BZ1:_ROW_BZ1 + 1,  0:28]
    w2  = w_ref[_ROW_W2:_ROW_W2 + 14,   0:28]
    b2  = w_ref[_ROW_B2:_ROW_B2 + 1,    0:28]
    wz2 = w_ref[_ROW_WZ2:_ROW_WZ2 + 28, 0:29]        # [we2 | wa2]
    bz2 = w_ref[_ROW_BZ2:_ROW_BZ2 + 1,  0:29]
    wh  = w_ref[_ROW_WH:_ROW_WH + 28,   0:2]         # folded linear1 @ linear2
    bh  = w_ref[_ROW_BH:_ROW_BH + 1,    0:2]

    # --- sage1: 7 -> 14 ---
    ax = jnp.dot(a, x, preferred_element_type=f32)
    x = _norm_relu(jnp.dot(ax, w1, preferred_element_type=f32) + b1)              # (N, 14)

    # --- pool1: N nodes -> 14 clusters (shared A@X, fused embed/assign matmul) ---
    ax = jnp.dot(a, x, preferred_element_type=f32)                                # (N, 14)
    h = jnp.dot(ax, wz1, preferred_element_type=f32) + bz1                        # (N, 28)
    z = _norm_relu(h[:, 0:14])                                                    # embed
    s = _softmax(_norm_relu(h[:, 14:28]))                                         # assign
    x = lax.dot_general(s, z, _CONTRACT0, preferred_element_type=f32)             # (14, 14)
    a = jnp.dot(lax.dot_general(s, a, _CONTRACT0, preferred_element_type=f32),
                s, preferred_element_type=f32)                                    # (14, 14)

    # --- sage2: 14 -> 28 ---
    ax = jnp.dot(a, x, preferred_element_type=f32)
    x = _norm_relu(jnp.dot(ax, w2, preferred_element_type=f32) + b2)              # (14, 28)

    # --- pool2 (final layer): 14 clusters -> 1 ---
    ax = jnp.dot(a, x, preferred_element_type=f32)                                # (14, 28)
    h = jnp.dot(ax, wz2, preferred_element_type=f32) + bz2                        # (14, 29)
    z = _norm_relu(h[:, 0:28])
    s = _softmax(_norm_relu(h[:, 28:29]))                                         # (14, 1) == ones
    x = lax.dot_general(s, z, _CONTRACT0, preferred_element_type=f32)             # (1, 28)
    a = jnp.dot(lax.dot_general(s, a, _CONTRACT0, preferred_element_type=f32),
                s, preferred_element_type=f32)                                    # (1, 1)

    # --- classifier head (linear1/linear2 folded on host, no nonlinearity between) ---
    y = jnp.dot(x, wh, preferred_element_type=f32) + bh                           # (1, 2)

    # --- single lane-dense output slab: row0 = x, row1 = a, row2 = y ---
    out_ref[...] = jnp.zeros_like(out_ref)
    out_ref[0:1, 0:28] = x
    out_ref[1:2, 0:1] = a
    out_ref[2:3, 0:2] = y


# --------------------------------- host helpers ---------------------------------

def _pack_params(p):
    """Concatenate / fold / lane-pad all weights into one (96, 128) f32 slab."""
    wz1 = jnp.concatenate([p['we1'], p['wa1']], axis=1)        # (14, 28)
    bz1 = jnp.concatenate([p['be1'], p['ba1']], axis=1)        # (1, 28)
    wz2 = jnp.concatenate([p['we2'], p['wa2']], axis=1)        # (28, 29)
    bz2 = jnp.concatenate([p['be2'], p['ba2']], axis=1)        # (1, 29)
    wh = p['wl1'] @ p['wl2']                                   # (28, 2)
    bh = p['bl1'] @ p['wl2'] + p['bl2']                        # (1, 2)

    def lane_pad(m):
        return jnp.pad(m.astype(jnp.float32), ((0, 0), (0, _LANES - m.shape[1])))

    slab = jnp.concatenate(
        [lane_pad(m) for m in (p['w1'], p['b1'], wz1, bz1, p['w2'], p['b2'],
                               wz2, bz2, wh, bh)], axis=0)
    assert slab.shape == (_SLAB_ROWS, _LANES)
    return slab


def classifier_forward_batched(xs, adjs, params):
    """xs: (B, N, 7), adjs: (B, N, N)  ->  (x (B,1,28), a (B,1,1), y (B,2))."""
    B, N, _ = xs.shape
    slab = _pack_params(params)
    out = pl.pallas_call(
        classifier_kernel,
        out_shape=jax.ShapeDtypeStruct((B, 8, _LANES), jnp.float32),
        grid=(B,),
        in_specs=[
            pl.BlockSpec((None, N, _N_FEAT_IN), lambda b: (b, 0, 0)),
            pl.BlockSpec((None, N, N), lambda b: (b, 0, 0)),
            pl.BlockSpec((_SLAB_ROWS, _LANES), lambda b: (0, 0)),   # resident across grid steps
        ],
        out_specs=pl.BlockSpec((None, 8, _LANES), lambda b: (b, 0, 0)),
        compiler_params=pltpu.CompilerParams(dimension_semantics=("parallel",)),
    )(xs, adjs, slab)
    x_out = out[:, 0:1, 0:28]      # (B, 1, 28)
    a_out = out[:, 1:2, 0:1]       # (B, 1, 1)
    y_out = out[:, 2, 0:2]         # (B, 2)
    return x_out, a_out, y_out


def classifier_forward(x, a, params):
    """Single graph, matches torch shapes: x (1,28), a (1,1), y (2,)."""
    xb, ab, yb = classifier_forward_batched(x[None], a[None], params)
    return xb[0], ab[0], yb[0]


# ------------------------- deterministic parameter init -------------------------

def init_params(key):
    def linear(k, fan_in, fan_out):
        kw, kb = jax.random.split(k)
        bound = 1.0 / jnp.sqrt(jnp.float32(fan_in))
        w = jax.random.uniform(kw, (fan_in, fan_out), jnp.float32, -bound, bound)
        b = jax.random.uniform(kb, (1, fan_out), jnp.float32, -bound, bound)
        return w, b

    keys = jax.random.split(key, 8)
    p = {}
    p['w1'],  p['b1']  = linear(keys[0], 7, 14)    # sage1
    p['we1'], p['be1'] = linear(keys[1], 14, 14)   # pool1 embed
    p['wa1'], p['ba1'] = linear(keys[2], 14, 14)   # pool1 assign
    p['w2'],  p['b2']  = linear(keys[3], 14, 28)   # sage2
    p['we2'], p['be2'] = linear(keys[4], 28, 28)   # pool2 embed
    p['wa2'], p['ba2'] = linear(keys[5], 28, 1)    # pool2 assign (final -> 1 cluster)
    p['wl1'], p['bl1'] = linear(keys[6], 28, 10)   # linear1
    p['wl2'], p['bl2'] = linear(keys[7], 10, 2)    # linear2
    return p


# ----------------------------- pure-JAX reference --------------------------------

def reference_forward(x, a, p):
    def sage(x, a, w, b):
        h = (a @ x) @ w + b
        h = h / jnp.maximum(jnp.sqrt(jnp.sum(h * h, -1, keepdims=True)), 1e-12)
        return jnp.maximum(h, 0.0)

    def softmax(z):
        e = jnp.exp(z - jnp.max(z, -1, keepdims=True))
        return e / jnp.sum(e, -1, keepdims=True)

    x = sage(x, a, p['w1'], p['b1'])
    z = sage(x, a, p['we1'], p['be1']); s = softmax(sage(x, a, p['wa1'], p['ba1']))
    x, a = s.T @ z, s.T @ a @ s
    x = sage(x, a, p['w2'], p['b2'])
    z = sage(x, a, p['we2'], p['be2']); s = softmax(sage(x, a, p['wa2'], p['ba2']))
    x, a = s.T @ z, s.T @ a @ s
    y = x @ p['wl1'] + p['bl1']
    y = y @ p['wl2'] + p['bl2']
    return x, a, y[0]


# ------------------------------------ main ----------------------------------------

if __name__ == "__main__":
    key = jax.random.PRNGKey(0)
    kx, ka, kp = jax.random.split(key, 3)

    B, N = 4, 8                                                  # batch of small graphs
    xs = jax.random.normal(kx, (B, N, 7), jnp.float32)           # node features
    rnd = (jax.random.uniform(ka, (B, N, N)) > 0.5).astype(jnp.float32)
    adjs = jnp.maximum(rnd, jnp.swapaxes(rnd, -1, -2)) + jnp.eye(N, dtype=jnp.float32)

    params = init_params(kp)

    # batched kernel call: one pallas_call, grid over graphs (parallel -> megacore on v7x)
    xout, aout, yout = classifier_forward_batched(xs, adjs, params)
    jax.block_until_ready((xout, aout, yout))
    assert xout.shape == (B, 1, 28) and aout.shape == (B, 1, 1) and yout.shape == (B, 2)

    for i in range(B):
        xr, ar, yr = reference_forward(xs[i], adjs[i], params)
        assert jnp.allclose(xout[i], xr, atol=1e-4, rtol=1e-4)
        assert jnp.allclose(aout[i], ar, atol=1e-4, rtol=1e-4)
        assert jnp.allclose(yout[i], yr, atol=1e-4, rtol=1e-4)

    # single-graph path (matches the torch module's shapes)
    x1, a1, y1 = classifier_forward(xs[0], adjs[0], params)
    jax.block_until_ready((x1, a1, y1))
    xr, ar, yr = reference_forward(xs[0], adjs[0], params)
    assert x1.shape == (1, 28) and a1.shape == (1, 1) and y1.shape == (2,)
    assert jnp.allclose(x1, xr, atol=1e-4, rtol=1e-4)
    assert jnp.allclose(a1, ar, atol=1e-4, rtol=1e-4)
    assert jnp.allclose(y1, yr, atol=1e-4, rtol=1e-4)

    print("KERNEL_OK")
</pallas_src>

<mosaic_0001>
module attributes {stable_mosaic.version = 11 : i64} {
  func.func @classifier_kernel(%arg0: i32, %arg1: memref<1x8x7xf32, #tpu.memory_space<vmem>>, %arg2: memref<1x8x8xf32, #tpu.memory_space<vmem>>, %arg3: memref<96x128xf32, #tpu.memory_space<vmem>>, %arg4: memref<1x8x128xf32, #tpu.memory_space<vmem>>) attributes {dimension_semantics = [#tpu.dimension_semantics<parallel>], iteration_bounds = array<i64: 4>, scalar_prefetch = 0 : i64, scratch_operands = 0 : i64, tpu.core_type = #tpu.core_type<tc>, window_params = [{transform_indices = @transform_0, window_bounds = array<i64: 1, 8, 7>}, {transform_indices = @transform_1, window_bounds = array<i64: 1, 8, 8>}, {pipeline_mode = #tpu.pipeline_mode<synchronous>, transform_indices = @transform_2, window_bounds = array<i64: 96, 128>}, {transform_indices = @transform_3, window_bounds = array<i64: 1, 8, 128>}]} {
    %c0 = arith.constant 0 : index
    %c0_0 = arith.constant 0 : index
    %c0_1 = arith.constant 0 : index
    %0 = vector.load %arg1[%c0, %c0_0, %c0_1] : memref<1x8x7xf32, #tpu.memory_space<vmem>>, vector<1x8x7xf32>
    %1 = vector.shape_cast %0 : vector<1x8x7xf32> to vector<8x7xf32>
    %c0_2 = arith.constant 0 : index
    %c0_3 = arith.constant 0 : index
    %c0_4 = arith.constant 0 : index
    %2 = vector.load %arg2[%c0_2, %c0_3, %c0_4] : memref<1x8x8xf32, #tpu.memory_space<vmem>>, vector<1x8x8xf32>
    %3 = vector.shape_cast %2 : vector<1x8x8xf32> to vector<8x8xf32>
    %c0_5 = arith.constant 0 : index
    %c0_6 = arith.constant 0 : index
    %4 = vector.load %arg3[%c0_5, %c0_6] : memref<96x128xf32, #tpu.memory_space<vmem>>, vector<7x14xf32>
    %c7 = arith.constant 7 : index
    %c0_7 = arith.constant 0 : index
    %5 = vector.load %arg3[%c7, %c0_7] : memref<96x128xf32, #tpu.memory_space<vmem>>, vector<1x14xf32>
    %c8 = arith.constant 8 : index
    %c0_8 = arith.constant 0 : index
    %6 = vector.load %arg3[%c8, %c0_8] : memref<96x128xf32, #tpu.memory_space<vmem>>, vector<14x28xf32>
    %c22 = arith.constant 22 : index
    %c0_9 = arith.constant 0 : index
    %7 = vector.load %arg3[%c22, %c0_9] : memref<96x128xf32, #tpu.memory_space<vmem>>, vector<1x28xf32>
    %c23 = arith.constant 23 : index
    %c0_10 = arith.constant 0 : index
    %8 = vector.load %arg3[%c23, %c0_10] : memref<96x128xf32, #tpu.memory_space<vmem>>, vector<14x28xf32>
    %c37 = arith.constant 37 : index
    %c0_11 = arith.constant 0 : index
    %9 = vector.load %arg3[%c37, %c0_11] : memref<96x128xf32, #tpu.memory_space<vmem>>, vector<1x28xf32>
    %c38 = arith.constant 38 : index
    %c0_12 = arith.constant 0 : index
    %10 = vector.load %arg3[%c38, %c0_12] : memref<96x128xf32, #tpu.memory_space<vmem>>, vector<28x29xf32>
    %c66 = arith.constant 66 : index
    %c0_13 = arith.constant 0 : index
    %11 = vector.load %arg3[%c66, %c0_13] : memref<96x128xf32, #tpu.memory_space<vmem>>, vector<1x29xf32>
    %c67 = arith.constant 67 : index
    %c0_14 = arith.constant 0 : index
    %12 = vector.load %arg3[%c67, %c0_14] : memref<96x128xf32, #tpu.memory_space<vmem>>, vector<28x2xf32>
    %c95 = arith.constant 95 : index
    %c0_15 = arith.constant 0 : index
    %13 = vector.load %arg3[%c95, %c0_15] : memref<96x128xf32, #tpu.memory_space<vmem>>, vector<1x2xf32>
    %cst = arith.constant dense<0.000000e+00> : vector<8x7xf32>
    %14 = tpu.matmul %3, %1, %cst {dimension_numbers = #tpu.dot_dimension_numbers<[1], [0], [0], [1], [0, 0, 1, 1], [], []>} : vector<8x8xf32>, vector<8x7xf32>, vector<8x7xf32> -> vector<8x7xf32>
    %cst_16 = arith.constant dense<0.000000e+00> : vector<8x14xf32>
    %15 = tpu.matmul %14, %4, %cst_16 {dimension_numbers = #tpu.dot_dimension_numbers<[1], [0], [0], [1], [0, 0, 1, 1], [], []>} : vector<8x7xf32>, vector<7x14xf32>, vector<8x14xf32> -> vector<8x14xf32>
    %16 = vector.broadcast %5 : vector<1x14xf32> to vector<8x14xf32>
    %17 = arith.addf %15, %16 : vector<8x14xf32>
    %18 = arith.mulf %17, %17 : vector<8x14xf32>
    %cst_17 = arith.constant dense<0.000000e+00> : vector<8xf32>
    %19 = vector.multi_reduction <add>, %18, %cst_17 [1] : vector<8x14xf32> to vector<8xf32>
    %20 = vector.shape_cast %19 : vector<8xf32> to vector<8x1xf32>
    %cst_18 = arith.constant 1.000000e-24 : f32
    %21 = vector.broadcast %cst_18 : f32 to vector<8x1xf32>
    %22 = arith.maximumf %20, %21 : vector<8x1xf32>
    %23 = math.rsqrt %22 : vector<8x1xf32>
    %24 = vector.broadcast %23 : vector<8x1xf32> to vector<8x14xf32>
    %25 = arith.mulf %17, %24 : vector<8x14xf32>
    %cst_19 = arith.constant 0.000000e+00 : f32
    %26 = vector.broadcast %cst_19 : f32 to vector<8x14xf32>
    %27 = arith.maximumf %25, %26 : vector<8x14xf32>
    %cst_20 = arith.constant dense<0.000000e+00> : vector<8x14xf32>
    %28 = tpu.matmul %3, %27, %cst_20 {dimension_numbers = #tpu.dot_dimension_numbers<[1], [0], [0], [1], [0, 0, 1, 1], [], []>} : vector<8x8xf32>, vector<8x14xf32>, vector<8x14xf32> -> vector<8x14xf32>
    %cst_21 = arith.constant dense<0.000000e+00> : vector<8x28xf32>
    %29 = tpu.matmul %28, %6, %cst_21 {dimension_numbers = #tpu.dot_dimension_numbers<[1], [0], [0], [1], [0, 0, 1, 1], [], []>} : vector<8x14xf32>, vector<14x28xf32>, vector<8x28xf32> -> vector<8x28xf32>
    %30 = vector.broadcast %7 : vector<1x28xf32> to vector<8x28xf32>
    %31 = arith.addf %29, %30 : vector<8x28xf32>
    %32 = vector.extract_strided_slice %31 {offsets = [0, 0], sizes = [8, 14], strides = [1, 1]} : vector<8x28xf32> to vector<8x14xf32>
    %33 = arith.mulf %32, %32 : vector<8x14xf32>
    %cst_22 = arith.constant dense<0.000000e+00> : vector<8xf32>
    %34 = vector.multi_reduction <add>, %33, %cst_22 [1] : vector<8x14xf32> to vector<8xf32>
    %35 = vector.shape_cast %34 : vector<8xf32> to vector<8x1xf32>
    %cst_23 = arith.constant 1.000000e-24 : f32
    %36 = vector.broadcast %cst_23 : f32 to vector<8x1xf32>
    %37 = arith.maximumf %35, %36 : vector<8x1xf32>
    %38 = math.rsqrt %37 : vector<8x1xf32>
    %39 = vector.broadcast %38 : vector<8x1xf32> to vector<8x14xf32>
    %40 = arith.mulf %32, %39 : vector<8x14xf32>
    %cst_24 = arith.constant 0.000000e+00 : f32
    %41 = vector.broadcast %cst_24 : f32 to vector<8x14xf32>
    %42 = arith.maximumf %40, %41 : vector<8x14xf32>
    %43 = vector.extract_strided_slice %31 {offsets = [0, 14], sizes = [8, 14], strides = [1, 1]} : vector<8x28xf32> to vector<8x14xf32>
    %44 = arith.mulf %43, %43 : vector<8x14xf32>
    %cst_25 = arith.constant dense<0.000000e+00> : vector<8xf32>
    %45 = vector.multi_reduction <add>, %44, %cst_25 [1] : vector<8x14xf32> to vector<8xf32>
    %46 = vector.shape_cast %45 : vector<8xf32> to vector<8x1xf32>
    %cst_26 = arith.constant 1.000000e-24 : f32
    %47 = vector.broadcast %cst_26 : f32 to vector<8x1xf32>
    %48 = arith.maximumf %46, %47 : vector<8x1xf32>
    %49 = math.rsqrt %48 : vector<8x1xf32>
    %50 = vector.broadcast %49 : vector<8x1xf32> to vector<8x14xf32>
    %51 = arith.mulf %43, %50 : vector<8x14xf32>
    %cst_27 = arith.constant 0.000000e+00 : f32
    %52 = vector.broadcast %cst_27 : f32 to vector<8x14xf32>
    %53 = arith.maximumf %51, %52 : vector<8x14xf32>
    %cst_28 = arith.constant dense<0xFF800000> : vector<8xf32>
    %54 = vector.multi_reduction <maximumf>, %53, %cst_28 [1] : vector<8x14xf32> to vector<8xf32>
    %55 = vector.shape_cast %54 : vector<8xf32> to vector<8x1xf32>
    %56 = vector.broadcast %55 : vector<8x1xf32> to vector<8x14xf32>
    %57 = arith.subf %53, %56 : vector<8x14xf32>
    %58 = math.exp %57 : vector<8x14xf32>
    %cst_29 = arith.constant dense<0.000000e+00> : vector<8xf32>
    %59 = vector.multi_reduction <add>, %58, %cst_29 [1] : vector<8x14xf32> to vector<8xf32>
    %60 = vector.shape_cast %59 : vector<8xf32> to vector<8x1xf32>
    %61 = vector.broadcast %60 : vector<8x1xf32> to vector<8x14xf32>
    %62 = arith.divf %58, %61 : vector<8x14xf32>
    %cst_30 = arith.constant dense<0.000000e+00> : vector<14x14xf32>
    %63 = tpu.matmul %62, %42, %cst_30 {dimension_numbers = #tpu.dot_dimension_numbers<[0], [0], [1], [1], [0, 1, 1, 1], [], []>} : vector<8x14xf32>, vector<8x14xf32>, vector<14x14xf32> -> vector<14x14xf32>
    %cst_31 = arith.constant dense<0.000000e+00> : vector<14x8xf32>
    %64 = tpu.matmul %62, %3, %cst_31 {dimension_numbers = #tpu.dot_dimension_numbers<[0], [0], [1], [1], [0, 1, 1, 1], [], []>} : vector<8x14xf32>, vector<8x8xf32>, vector<14x8xf32> -> vector<14x8xf32>
    %cst_32 = arith.constant dense<0.000000e+00> : vector<14x14xf32>
    %65 = tpu.matmul %64, %62, %cst_32 {dimension_numbers = #tpu.dot_dimension_numbers<[1], [0], [0], [1], [0, 0, 1, 1], [], []>} : vector<14x8xf32>, vector<8x14xf32>, vector<14x14xf32> -> vector<14x14xf32>
    %cst_33 = arith.constant dense<0.000000e+00> : vector<14x14xf32>
    %66 = tpu.matmul %65, %63, %cst_33 {dimension_numbers = #tpu.dot_dimension_numbers<[1], [0], [0], [1], [0, 0, 1, 1], [], []>} : vector<14x14xf32>, vector<14x14xf32>, vector<14x14xf32> -> vector<14x14xf32>
    %cst_34 = arith.constant dense<0.000000e+00> : vector<14x28xf32>
    %67 = tpu.matmul %66, %8, %cst_34 {dimension_numbers = #tpu.dot_dimension_numbers<[1], [0], [0], [1], [0, 0, 1, 1], [], []>} : vector<14x14xf32>, vector<14x28xf32>, vector<14x28xf32> -> vector<14x28xf32>
    %68 = vector.broadcast %9 : vector<1x28xf32> to vector<14x28xf32>
    %69 = arith.addf %67, %68 : vector<14x28xf32>
    %70 = arith.mulf %69, %69 : vector<14x28xf32>
    %cst_35 = arith.constant dense<0.000000e+00> : vector<14xf32>
    %71 = vector.multi_reduction <add>, %70, %cst_35 [1] : vector<14x28xf32> to vector<14xf32>
    %72 = vector.shape_cast %71 : vector<14xf32> to vector<14x1xf32>
    %cst_36 = arith.constant 1.000000e-24 : f32
    %73 = vector.broadcast %cst_36 : f32 to vector<14x1xf32>
    %74 = arith.maximumf %72, %73 : vector<14x1xf32>
    %75 = math.rsqrt %74 : vector<14x1xf32>
    %76 = vector.broadcast %75 : vector<14x1xf32> to vector<14x28xf32>
    %77 = arith.mulf %69, %76 : vector<14x28xf32>
    %cst_37 = arith.constant 0.000000e+00 : f32
    %78 = vector.broadcast %cst_37 : f32 to vector<14x28xf32>
    %79 = arith.maximumf %77, %78 : vector<14x28xf32>
    %cst_38 = arith.constant dense<0.000000e+00> : vector<14x28xf32>
    %80 = tpu.matmul %65, %79, %cst_38 {dimension_numbers = #tpu.dot_dimension_numbers<[1], [0], [0], [1], [0, 0, 1, 1], [], []>} : vector<14x14xf32>, vector<14x28xf32>, vector<14x28xf32> -> vector<14x28xf32>
    %cst_39 = arith.constant dense<0.000000e+00> : vector<14x29xf32>
    %81 = tpu.matmul %80, %10, %cst_39 {dimension_numbers = #tpu.dot_dimension_numbers<[1], [0], [0], [1], [0, 0, 1, 1], [], []>} : vector<14x28xf32>, vector<28x29xf32>, vector<14x29xf32> -> vector<14x29xf32>
    %82 = vector.broadcast %11 : vector<1x29xf32> to vector<14x29xf32>
    %83 = arith.addf %81, %82 : vector<14x29xf32>
    %84 = vector.extract_strided_slice %83 {offsets = [0, 0], sizes = [14, 28], strides = [1, 1]} : vector<14x29xf32> to vector<14x28xf32>
    %85 = arith.mulf %84, %84 : vector<14x28xf32>
    %cst_40 = arith.constant dense<0.000000e+00> : vector<14xf32>
    %86 = vector.multi_reduction <add>, %85, %cst_40 [1] : vector<14x28xf32> to vector<14xf32>
    %87 = vector.shape_cast %86 : vector<14xf32> to vector<14x1xf32>
    %cst_41 = arith.constant 1.000000e-24 : f32
    %88 = vector.broadcast %cst_41 : f32 to vector<14x1xf32>
    %89 = arith.maximumf %87, %88 : vector<14x1xf32>
    %90 = math.rsqrt %89 : vector<14x1xf32>
    %91 = vector.broadcast %90 : vector<14x1xf32> to vector<14x28xf32>
    %92 = arith.mulf %84, %91 : vector<14x28xf32>
    %cst_42 = arith.constant 0.000000e+00 : f32
    %93 = vector.broadcast %cst_42 : f32 to vector<14x28xf32>
    %94 = arith.maximumf %92, %93 : vector<14x28xf32>
    %95 = vector.extract_strided_slice %83 {offsets = [0, 28], sizes = [14, 1], strides = [1, 1]} : vector<14x29xf32> to vector<14x1xf32>
    %96 = arith.mulf %95, %95 : vector<14x1xf32>
    %cst_43 = arith.constant dense<0.000000e+00> : vector<14xf32>
    %97 = vector.multi_reduction <add>, %96, %cst_43 [1] : vector<14x1xf32> to vector<14xf32>
    %98 = vector.shape_cast %97 : vector<14xf32> to vector<14x1xf32>
    %cst_44 = arith.constant 1.000000e-24 : f32
    %99 = vector.broadcast %cst_44 : f32 to vector<14x1xf32>
    %100 = arith.maximumf %98, %99 : vector<14x1xf32>
    %101 = math.rsqrt %100 : vector<14x1xf32>
    %102 = arith.mulf %95, %101 : vector<14x1xf32>
    %cst_45 = arith.constant 0.000000e+00 : f32
    %103 = vector.broadcast %cst_45 : f32 to vector<14x1xf32>
    %104 = arith.maximumf %102, %103 : vector<14x1xf32>
    %cst_46 = arith.constant dense<0xFF800000> : vector<14xf32>
    %105 = vector.multi_reduction <maximumf>, %104, %cst_46 [1] : vector<14x1xf32> to vector<14xf32>
    %106 = vector.shape_cast %105 : vector<14xf32> to vector<14x1xf32>
    %107 = arith.subf %104, %106 : vector<14x1xf32>
    %108 = math.exp %107 : vector<14x1xf32>
    %cst_47 = arith.constant dense<0.000000e+00> : vector<14xf32>
    %109 = vector.multi_reduction <add>, %108, %cst_47 [1] : vector<14x1xf32> to vector<14xf32>
    %110 = vector.shape_cast %109 : vector<14xf32> to vector<14x1xf32>
    %111 = arith.divf %108, %110 : vector<14x1xf32>
    %cst_48 = arith.constant dense<0.000000e+00> : vector<1x28xf32>
    %112 = tpu.matmul %111, %94, %cst_48 {dimension_numbers = #tpu.dot_dimension_numbers<[0], [0], [1], [1], [0, 1, 1, 1], [], []>} : vector<14x1xf32>, vector<14x28xf32>, vector<1x28xf32> -> vector<1x28xf32>
    %cst_49 = arith.constant dense<0.000000e+00> : vector<1x14xf32>
    %113 = tpu.matmul %111, %65, %cst_49 {dimension_numbers = #tpu.dot_dimension_numbers<[0], [0], [1], [1], [0, 1, 1, 1], [], []>} : vector<14x1xf32>, vector<14x14xf32>, vector<1x14xf32> -> vector<1x14xf32>
    %cst_50 = arith.constant dense<0.000000e+00> : vector<1x1xf32>
    %114 = tpu.matmul %113, %111, %cst_50 {dimension_numbers = #tpu.dot_dimension_numbers<[1], [0], [0], [1], [0, 0, 1, 1], [], []>} : vector<1x14xf32>, vector<14x1xf32>, vector<1x1xf32> -> vector<1x1xf32>
    %cst_51 = arith.constant dense<0.000000e+00> : vector<1x2xf32>
    %115 = tpu.matmul %112, %12, %cst_51 {dimension_numbers = #tpu.dot_dimension_numbers<[1], [0], [0], [1], [0, 0, 1, 1], [], []>} : vector<1x28xf32>, vector<28x2xf32>, vector<1x2xf32> -> vector<1x2xf32>
    %116 = arith.addf %115, %13 : vector<1x2xf32>
    %cst_52 = arith.constant 0.000000e+00 : f32
    %117 = vector.broadcast %cst_52 : f32 to vector<8x128xf32>
    %c0_53 = arith.constant 0 : index
    %c0_54 = arith.constant 0 : index
    %c0_55 = arith.constant 0 : index
    %118 = vector.load %arg4[%c0_53, %c0_54, %c0_55] : memref<1x8x128xf32, #tpu.memory_space<vmem>>, vector<1x8x128xf32>
    %119 = vector.shape_cast %118 : vector<1x8x128xf32> to vector<8x128xf32>
    %120 = vector.shape_cast %117 : vector<8x128xf32> to vector<1x8x128xf32>
    tpu.vector_store %arg4[%c0_53, %c0_54, %c0_55], %120 {strides = array<i32>} : memref<1x8x128xf32, #tpu.memory_space<vmem>>, vector<1x8x128xf32>,
    %c0_56 = arith.constant 0 : index
    %c0_57 = arith.constant 0 : index
    %c0_58 = arith.constant 0 : index
    %121 = vector.load %arg4[%c0_56, %c0_57, %c0_58] : memref<1x8x128xf32, #tpu.memory_space<vmem>>, vector<1x1x28xf32>
    %122 = vector.shape_cast %121 : vector<1x1x28xf32> to vector<1x28xf32>
    %123 = vector.shape_cast %112 : vector<1x28xf32> to vector<1x1x28xf32>
    tpu.vector_store %arg4[%c0_56, %c0_57, %c0_58], %123 {strides = array<i32>} : memref<1x8x128xf32, #tpu.memory_space<vmem>>, vector<1x1x28xf32>,
    %c0_59 = arith.constant 0 : index
    %c1 = arith.constant 1 : index
    %c0_60 = arith.constant 0 : index
    %124 = vector.load %arg4[%c0_59, %c1, %c0_60] : memref<1x8x128xf32, #tpu.memory_space<vmem>>, vector<1x1x1xf32>
    %125 = vector.shape_cast %124 : vector<1x1x1xf32> to vector<1x1xf32>
    %126 = vector.shape_cast %114 : vector<1x1xf32> to vector<1x1x1xf32>
    tpu.vector_store %arg4[%c0_59, %c1, %c0_60], %126 {strides = array<i32>} : memref<1x8x128xf32, #tpu.memory_space<vmem>>, vector<1x1x1xf32>,
    %c0_61 = arith.constant 0 : index
    %c2 = arith.constant 2 : index
    %c0_62 = arith.constant 0 : index
    %127 = vector.load %arg4[%c0_61, %c2, %c0_62] : memref<1x8x128xf32, #tpu.memory_space<vmem>>, vector<1x1x2xf32>
    %128 = vector.shape_cast %127 : vector<1x1x2xf32> to vector<1x2xf32>
    %129 = vector.shape_cast %116 : vector<1x2xf32> to vector<1x1x2xf32>
    tpu.vector_store %arg4[%c0_61, %c2, %c0_62], %129 {strides = array<i32>} : memref<1x8x128xf32, #tpu.memory_space<vmem>>, vector<1x1x2xf32>,
    return
  }
  func.func @transform_0(%arg0: i32) -> (i32, i32, i32) {
    %c0_i32 = arith.constant 0 : i32
    %c0_i32_0 = arith.constant 0 : i32
    %c0_i32_1 = arith.constant 0 : i32
    return %arg0, %c0_i32, %c0_i32_0 : i32, i32, i32
  }
  func.func @transform_1(%arg0: i32) -> (i32, i32, i32) {
    %c0_i32 = arith.constant 0 : i32
    %c0_i32_0 = arith.constant 0 : i32
    %c0_i32_1 = arith.constant 0 : i32
    return %arg0, %c0_i32, %c0_i32_0 : i32, i32, i32
  }
  func.func @transform_2(%arg0: i32) -> (i32, i32) {
    %c0_i32 = arith.constant 0 : i32
    %c0_i32_0 = arith.constant 0 : i32
    %c0_i32_1 = arith.constant 0 : i32
    return %c0_i32, %c0_i32_0 : i32, i32
  }
  func.func @transform_3(%arg0: i32) -> (i32, i32, i32) {
    %c0_i32 = arith.constant 0 : i32
    %c0_i32_0 = arith.constant 0 : i32
    %c0_i32_1 = arith.constant 0 : i32
    return %arg0, %c0_i32, %c0_i32_0 : i32, i32, i32
  }
}

</mosaic_0001>

<llo_original>
// kernel: tpu_custom_call.1
$region0: #{tpu_custom_call.1}
  #allocation0 [shape = 'u32[]', space=smem, size = 0x4, offset = 0x4, fixed_abs, tag = 'smem constant byte address 0x4 - core index']
  #allocation1 [shape = 'u32[144,128]{1,0:T(1,128)}', space=vmem, size = 0x12000, scoped, tag = 'internal scratch']
  %s0 = inlined_call_operand.vmem [shape: f32[4,8,7], index: 0, kind: input, shape index: {}]
  %s1 = inlined_call_operand.vmem [shape: f32[4,8,8], index: 1, kind: input, shape index: {}]
  %s2 = inlined_call_operand.hbm [shape: f32[96,128], index: 2, kind: input, shape index: {}]
  %s3 = inlined_call_operand.hbm [shape: f32[4,8,128], index: 3, kind: output, shape index: {}]
  %s4 = sld [smem:[#allocation0]]
  $region49: #{tpu_custom_call.1} parent=0
    _
  %s6 = ssub.s32 1, %s4
  %s7 = scalar_select 0, %s6, %s4
  $region1: #{tpu_custom_call.1} parent=0
    #allocation2 [shape = 'u8[49152]{0}', space=vmem, size = 0xc000, scoped, tag = 'input window, operand 2, single buffered']
    #allocation3 [shape = 's32[2]{0}', space=sflag, size = 0x8, scoped, tag = 'scoped memory for tpu_custom_call.1']
    #allocation4 [shape = 's32[2]{0}', space=sflag, size = 0x8, scoped, tag = 'scoped memory for tpu_custom_call.1']
    #allocation5 [shape = 'u8[8192]{0}', space=vmem, size = 0x2000, scoped, tag = 'output window, operand 0']
    %8 = vsyncpa [#allocation3], 0
    %9 = vsyncpa [#allocation4], 0
    %s10 = scalar_lea.sflag [#allocation4], 1
    %11 = vsyncpa %s10, 0
    loop: start=0, step=1, limit=6
    $region2: #{tpu_custom_call.1} parent=1 // loop_pre_header
      _
    $region3: #{tpu_custom_call.1} parent=1 // loop_header
      %s13 = sphi 0, %s17
      %p14 = scmp.ge.s32.totalorder %s13, 6
      %s23 = sphi 0, %s25
      %s26 = sphi 0, %s23
      %s27 = sphi 0, %s26
      %s43 = sphi 0, %s27
      %s49 = sphi 0, %s51
      %s52 = sphi 0, %s49
      %s53 = sphi 0, %s52
      %s69 = sphi 0, %s53
      %s73 = sphi 0, %s73
      %s75 = sphi 0, %s73
      %s76 = sphi 0, %s75
      %s90 = sphi 0, %s76
      %s96 = sphi 0, %s98
      %s99 = sphi 0, %s96
      %s100 = sphi 0, %s99
      %s116 = sphi 0, %s100
    $region4: #{tpu_custom_call.1} parent=1 // loop_header_branch
      %16 = sbr.rel (%p14) target = $region8
    $region5: #{tpu_custom_call.1} parent=1 // loop_body
      %s18 = ssub.s32 %s13, 1
      %s19 = ssub.s32 %s13, 2
      %s20 = sadd.s32 %s13, 1
      %s21 = ssub.s32 %s13, %s20
      %p22 = scmp.eq.s32.totalorder %s21, 0
      %s24 = sadd.s32 %s23, 1
      %s25 = scalar_select %p22, %s23, %s24
      %p28 = pneg %p22
      %p29 = scmp.eq.s32.totalorder %s13, 3
      %p30 = por %p28, %p29
      %p31 = scmp.ne.s32.totalorder %s23, %s26
      %p32 = scmp.eq.s32.totalorder %s13, 0
      %p33 = por %p31, %p32
      %p34 = scmp.ne.s32.totalorder %s23, %s26
      %p35 = scmp.eq.s32.totalorder %s18, 3
      %p36 = por %p34, %p35
      %p37 = scmp.ne.s32.totalorder %s26, %s27
      %p38 = scmp.eq.s32.totalorder %s18, 0
      %p39 = por %p37, %p38
      %p40 = scmp.ne.s32.totalorder %s26, %s27
      %p41 = scmp.eq.s32.totalorder %s19, 3
      %p42 = por %p40, %p41
      %p44 = scmp.ne.s32.totalorder %s27, %s43
      %p45 = scmp.eq.s32.totalorder %s19, 0
      %p46 = por %p44, %p45
      %s47 = ssub.s32 %s13, %s20
      %p48 = scmp.eq.s32.totalorder %s47, 0
      %s50 = sadd.s32 %s49, 1
      %s51 = scalar_select %p48, %s49, %s50
      %p54 = pneg %p48
      %p55 = scmp.eq.s32.totalorder %s13, 3
      %p56 = por %p54, %p55
      %p57 = scmp.ne.s32.totalorder %s49, %s52
      %p58 = scmp.eq.s32.totalorder %s13, 0
      %p59 = por %p57, %p58
      %p60 = scmp.ne.s32.totalorder %s49, %s52
      %p61 = scmp.eq.s32.totalorder %s18, 3
      %p62 = por %p60, %p61
      %p63 = scmp.ne.s32.totalorder %s52, %s53
      %p64 = scmp.eq.s32.totalorder %s18, 0
      %p65 = por %p63, %p64
      %p66 = scmp.ne.s32.totalorder %s52, %s53
      %p67 = scmp.eq.s32.totalorder %s19, 3
      %p68 = por %p66, %p67
      %p70 = scmp.ne.s32.totalorder %s53, %s69
      %p71 = scmp.eq.s32.totalorder %s19, 0
      %p72 = por %p70, %p71
      %s74 = sadd.s32 %s73, 1
      %p77 = scmp.eq.s32.totalorder %s13, 3
      %p78 = scmp.ne.s32.totalorder %s73, %s75
      %p79 = scmp.eq.s32.totalorder %s13, 0
      %p80 = por %p78, %p79
      %p81 = scmp.ne.s32.totalorder %s73, %s75
      %p82 = scmp.eq.s32.totalorder %s18, 3
      %p83 = por %p81, %p82
      %p84 = scmp.ne.s32.totalorder %s75, %s76
      %p85 = scmp.eq.s32.totalorder %s18, 0
      %p86 = por %p84, %p85
      %p87 = scmp.ne.s32.totalorder %s75, %s76
      %p88 = scmp.eq.s32.totalorder %s19, 3
      %p89 = por %p87, %p88
      %p91 = scmp.ne.s32.totalorder %s76, %s90
      %p92 = scmp.eq.s32.totalorder %s19, 0
      %p93 = por %p91, %p92
      %s94 = ssub.s32 %s13, %s20
      %p95 = scmp.eq.s32.totalorder %s94, 0
      %s97 = sadd.s32 %s96, 1
      %s98 = scalar_select %p95, %s96, %s97
      %p101 = pneg %p95
      %p102 = scmp.eq.s32.totalorder %s13, 3
      %p103 = por %p101, %p102
      %p104 = scmp.ne.s32.totalorder %s96, %s99
      %p105 = scmp.eq.s32.totalorder %s13, 0
      %p106 = por %p104, %p105
      %p107 = scmp.ne.s32.totalorder %s96, %s99
      %p108 = scmp.eq.s32.totalorder %s18, 3
      %p109 = por %p107, %p108
      %p110 = scmp.ne.s32.totalorder %s99, %s100
      %p111 = scmp.eq.s32.totalorder %s18, 0
      %p112 = por %p110, %p111
      %p113 = scmp.ne.s32.totalorder %s99, %s100
      %p114 = scmp.eq.s32.totalorder %s19, 3
      %p115 = por %p113, %p114
      %p117 = scmp.ne.s32.totalorder %s100, %s116
      %p118 = scmp.eq.s32.totalorder %s19, 0
      %p119 = por %p117, %p118
      %p120 = scmp.le.s32.totalorder 1, %s13
      %p121 = scmp.lt.s32.totalorder %s13, 5
      %p122 = pnand %p120, %p121
      %p123 = pneg %p122
      // Predicated region
      $region9: #{tpu_custom_call.1} parent=5 // pred_check
        _
      $region10: #{tpu_custom_call.1} parent=5 // pred_check_branch
        %125 = sbr.rel (%p122) target = $region12
      $region11: #{tpu_custom_call.1} parent=5 // pred_region
        %s126 = ssub.s32 %s13, 1
        // Predicated region
        $region13: #{tpu_custom_call.1} parent=11 // pred_check
          %p127 = pneg %p86
        $region14: #{tpu_custom_call.1} parent=11 // pred_check_branch
          %129 = sbr.rel (%p127) target = $region16
        $region15: #{tpu_custom_call.1} parent=11 // pred_region
          %s131 = ssub.s32 1536, 1536
          %132 = vsyncadd [#allocation3], %s131
          %s133 = sshll.u32 [#allocation2], 4
          %s134 = int_to_ptr.vmem [resolvable:$true] %s133
          %139 = dma.hbm_to_vmem [thread:$0]  %s2, 1536, %s134, [#allocation3], 128, 128, 8
        $region16: #{tpu_custom_call.1} parent=11 // pred_fallthru
          _
      $region12: #{tpu_custom_call.1} parent=5 // pred_fallthru
        _
      %p140 = scmp.lt.s32.totalorder %s13, 4
      // Predicated region
      $region17: #{tpu_custom_call.1} parent=5 // pred_check
        %p141 = pneg %p140
      $region18: #{tpu_custom_call.1} parent=5 // pred_check_branch
        %143 = sbr.rel (%p141) target = $region20
      $region19: #{tpu_custom_call.1} parent=5 // pred_region
        // Predicated region
        $region21: #{tpu_custom_call.1} parent=19 // pred_check
          %p144 = pneg %p33
        $region22: #{tpu_custom_call.1} parent=19 // pred_check_branch
          %146 = sbr.rel (%p144) target = $region24
        $region23: #{tpu_custom_call.1} parent=19 // pred_region
          %p147 = scmp.lt.s32.totalorder %s13, 3
          %s148 = scalar_select %p147, %s13, 3
          %s149 = smul.addr %s148, 8
          %s150 = scalar_lea.vmem %s0, %s149
        $region24: #{tpu_custom_call.1} parent=19 // pred_fallthru
          _
        // Predicated region
        $region25: #{tpu_custom_call.1} parent=19 // pred_check
          %p151 = pneg %p59
        $region26: #{tpu_custom_call.1} parent=19 // pred_check_branch
          %153 = sbr.rel (%p151) target = $region28
        $region27: #{tpu_custom_call.1} parent=19 // pred_region
          %p154 = scmp.lt.s32.totalorder %s13, 3
          %s155 = scalar_select %p154, %s13, 3
          %s156 = smul.addr %s155, 8
          %s157 = scalar_lea.vmem %s1, %s156
        $region28: #{tpu_custom_call.1} parent=19 // pred_fallthru
          _
      $region20: #{tpu_custom_call.1} parent=5 // pred_fallthru
        _
      %p158 = scmp.le.s32.totalorder 1, %s13
      %p159 = scmp.lt.s32.totalorder %s13, 5
      %p160 = pnand %p158, %p159
      %p161 = pneg %p160
      // Predicated region
      $region29: #{tpu_custom_call.1} parent=5 // pred_check
        _
      $region30: #{tpu_custom_call.1} parent=5 // pred_check_branch
        %163 = sbr.rel (%p160) target = $region32
      $region31: #{tpu_custom_call.1} parent=5 // pred_region
        %s164 = ssub.s32 %s13, 1
        // Predicated region
        $region33: #{tpu_custom_call.1} parent=31 // pred_check
          %p165 = pneg %p86
        $region34: #{tpu_custom_call.1} parent=31 // pred_check_branch
          %167 = sbr.rel (%p165) target = $region36
        $region35: #{tpu_custom_call.1} parent=31 // pred_region
          %168 = dma.done [#allocation3], 1536
        $region36: #{tpu_custom_call.1} parent=31 // pred_fallthru
          _
        %p169 = scmp.lt.s32.totalorder %s18, 3
        %s170 = scalar_select %p169, %s18, 3
        %s171 = smul.addr %s170, 8
        %s172 = scalar_lea.vmem %s0, %s171
        %p173 = pneg %p39
        %p174 = pneg %p36
        %p175 = scmp.lt.s32.totalorder %s18, 3
        %s176 = scalar_select %p175, %s18, 3
        %s177 = smul.addr %s176, 8
        %s178 = scalar_lea.vmem %s1, %s177
        %p179 = pneg %p65
        %p180 = pneg %p62
        %p181 = pneg %p86
        %p182 = pneg %p83
        %p183 = pneg %p112
        %p184 = pneg %p109
        %s185 = sand.u32 %s99, 1
        %s186 = scalar_lea.sflag [#allocation4], %s185
        %s187 = sand.u32 %s99, 1
        %s188 = smul.addr %s187, 8
        %s189 = scalar_lea.vmem [#allocation5], %s188
        %p190 = scmp.lt.s32.totalorder %s18, 3
        %s191 = scalar_select %p190, %s18, 3
        %s192 = smul.addr %s191, 8
        %s193 = scalar_lea.vmem %s0, %s192
        %p194 = scmp.lt.s32.totalorder %s18, 3
        %s195 = scalar_select %p194, %s18, 3
        %s196 = smul.addr %s195, 8
        %s197 = scalar_lea.vmem %s1, %s196
        %v198 = vld [vmem:[%s193] sm:$0xff]
        %v199 = vld [vmem:[%s197] sm:$0xff]
        %v200 = vld [vmem:[#allocation2] sm:$0x7f]
        %v201 = vld [vmem:[#allocation2 + $0x7] sm:$0x1]
        %v202 = vld [vmem:[#allocation2 + $0x8] sm:$0xff]
        %v203 = vld [vmem:[#allocation2 + $0x10] sm:$0x3f]
        %v204 = vld [vmem:[#allocation2 + $0x16] sm:$0x1]
        %v205 = vld [vmem:[#allocation2 + $0x17] sm:$0xff]
        %v206 = vld [vmem:[#allocation2 + $0x1f] sm:$0x3f]
        %v207 = vld [vmem:[#allocation2 + $0x25] sm:$0x1]
        %v208 = vld [vmem:[#allocation2 + $0x26] sm:$0xff]
        %v209 = vld [vmem:[#allocation2 + $0x2e] sm:$0xff]
        %v210 = vld [vmem:[#allocation2 + $0x36] sm:$0xff]
        %v211 = vld [vmem:[#allocation2 + $0x3e] sm:$0xf]
        %v212 = vld [vmem:[#allocation2 + $0x42] sm:$0x1]
        %v213 = vld [vmem:[#allocation2 + $0x43] sm:$0xff]
        %v214 = vld [vmem:[#allocation2 + $0x4b] sm:$0xff]
        %v215 = vld [vmem:[#allocation2 + $0x53] sm:$0xff]
        %v216 = vld [vmem:[#allocation2 + $0x5b] sm:$0xf]
        %v217 = vld [vmem:[#allocation2 + $0x5f] sm:$0x1]
        %vm218 = vcmask 64512
        %v220 = vsel %vm218, %v199, 0
        %222 = vmatprep.subr.mxu0 0.0
        %223 = vmatpush1.msra.mxu0 %v198
        %224 = vmatprep.subr.mxu0 0.0
        %225 = vmatpush1.msra.mxu0 0.0
        %226 = vmatprep.subr.mxu0 0.0
        %227 = vmatpush1.msra.mxu0 0.0
        %228 = vmatprep.subr.mxu0 0.0
        %229 = vmatpush1.msra.mxu0 0.0
        %230 = vmatprep.subr.mxu0 0.0
        %231 = vmatpush1.msra.mxu0 0.0
        %232 = vmatprep.subr.mxu0 0.0
        %233 = vmatpush1.msra.mxu0 0.0
        %234 = vmatprep.subr.mxu0 0.0
        %235 = vmatpush1.msra.mxu0 0.0
        %236 = vmatprep.subr.mxu0 0.0
        %237 = vmatpush1.msra.mxu0 0.0
        %238 = vmatprep.subr.mxu0 0.0
        %239 = vmatpush1.msra.mxu0 0.0
        %240 = vmatprep.subr.mxu0 0.0
        %241 = vmatpush1.msra.mxu0 0.0
        %242 = vmatprep.subr.mxu0 0.0
        %243 = vmatpush1.msra.mxu0 0.0
        %244 = vmatprep.subr.mxu0 0.0
        %245 = vmatpush1.msra.mxu0 0.0
        %246 = vmatprep.subr.mxu0 0.0
        %247 = vmatpush1.msra.mxu0 0.0
        %248 = vmatprep.subr.mxu0 0.0
        %249 = vmatpush1.msra.mxu0 0.0
        %250 = vmatprep.subr.mxu0 0.0
        %251 = vmatpush1.msra.mxu0 0.0
        %252 = vmatprep.subr.mxu0 0.0
        %253 = vmatpush1.msra.mxu0 0.0
        %254 = vmatprep.subr.mxu0 0.0
        %255 = vmatpush1.msra.mxu0 0.0
        %256 = vmatprep.subr.mxu0 0.0
        %257 = vmatpush1.msra.mxu0 0.0
        %258 = vmatprep.subr.mxu0 0.0
        %259 = vmatpush1.msra.mxu0 0.0
        %260 = vmatprep.subr.mxu0 0.0
        %261 = vmatpush1.msra.mxu0 0.0
        %262 = vmatprep.subr.mxu0 0.0
        %263 = vmatpush1.msra.mxu0 0.0
        %264 = vmatprep.subr.mxu0 0.0
        %265 = vmatpush1.msra.mxu0 0.0
        %266 = vmatprep.subr.mxu0 0.0
        %267 = vmatpush1.msra.mxu0 0.0
        %268 = vmatprep.subr.mxu0 0.0
        %269 = vmatpush1.msra.mxu0 0.0
        %270 = vmatprep.subr.mxu0 0.0
        %271 = vmatpush1.msra.mxu0 0.0
        %272 = vmatprep.subr.mxu0 0.0
        %273 = vmatpush1.msra.mxu0 0.0
        %274 = vmatprep.subr.mxu0 0.0
        %275 = vmatpush1.msra.mxu0 0.0
        %276 = vmatprep.subr.mxu0 0.0
        %277 = vmatpush1.msra.mxu0 0.0
        %278 = vmatprep.subr.mxu0 0.0
        %279 = vmatpush1.msra.mxu0 0.0
        %280 = vmatprep.subr.mxu0 0.0
        %281 = vmatpush1.msra.mxu0 0.0
        %282 = vmatprep.subr.mxu0 0.0
        %283 = vmatpush1.msra.mxu0 0.0
        %284 = vmatprep.subr.mxu0 0.0
        %285 = vmatpush1.msra.mxu0 0.0
        %286 = vmatprep.mubr.f32.mxu0 0.0
        %287 = vmatmul.mubr.f32.gmra.mrb[0].mxu0 %v220
        %v288 = vpop.f32.mrb[0].mxu0
        %v289 = vadd.f32 0.0, %v288
        %v290 = vpop.f32.mrb[0].mxu0
        %291 = vdwg.mxu0
        %v292 = vlaneseq
        %v293 = vshrl.u32 %v292, 7
        %v294 = vsub.s32 0, %v293
        %v295 = vrot.slane %v201, %v294
        %vm296 = vcmask 56320
        %v298 = vsel %vm296, %v289, 0
        %vm300 = vcmask 1046528
        %v302 = vsel %vm300, %v200, 0
        %304 = vmatprep.subr.mxu0 0.0
        %305 = vmatpush1.msra.mxu0 %v302
        %306 = vmatprep.subr.mxu0 0.0
        %307 = vmatpush1.msra.mxu0 0.0
        %308 = vmatprep.subr.mxu0 0.0
        %309 = vmatpush1.msra.mxu0 0.0
        %310 = vmatprep.subr.mxu0 0.0
        %311 = vmatpush1.msra.mxu0 0.0
        %312 = vmatprep.subr.mxu0 0.0
        %313 = vmatpush1.msra.mxu0 0.0
        %314 = vmatprep.subr.mxu0 0.0
        %315 = vmatpush1.msra.mxu0 0.0
        %316 = vmatprep.subr.mxu0 0.0
        %317 = vmatpush1.msra.mxu0 0.0
        %318 = vmatprep.subr.mxu0 0.0
        %319 = vmatpush1.msra.mxu0 0.0
        %320 = vmatprep.subr.mxu0 0.0
        %321 = vmatpush1.msra.mxu0 0.0
        %322 = vmatprep.subr.mxu0 0.0
        %323 = vmatpush1.msra.mxu0 0.0
        %324 = vmatprep.subr.mxu0 0.0
        %325 = vmatpush1.msra.mxu0 0.0
        %326 = vmatprep.subr.mxu0 0.0
        %327 = vmatpush1.msra.mxu0 0.0
        %328 = vmatprep.subr.mxu0 0.0
        %329 = vmatpush1.msra.mxu0 0.0
        %330 = vmatprep.subr.mxu0 0.0
        %331 = vmatpush1.msra.mxu0 0.0
        %332 = vmatprep.subr.mxu0 0.0
        %333 = vmatpush1.msra.mxu0 0.0
        %334 = vmatprep.subr.mxu0 0.0
        %335 = vmatpush1.msra.mxu0 0.0
        %336 = vmatprep.subr.mxu0 0.0
        %337 = vmatpush1.msra.mxu0 0.0
        %338 = vmatprep.subr.mxu0 0.0
        %339 = vmatpush1.msra.mxu0 0.0
        %340 = vmatprep.subr.mxu0 0.0
        %341 = vmatpush1.msra.mxu0 0.0
        %342 = vmatprep.subr.mxu0 0.0
        %343 = vmatpush1.msra.mxu0 0.0
        %344 = vmatprep.subr.mxu0 0.0
        %345 = vmatpush1.msra.mxu0 0.0
        %346 = vmatprep.subr.mxu0 0.0
        %347 = vmatpush1.msra.mxu0 0.0
        %348 = vmatprep.subr.mxu0 0.0
        %349 = vmatpush1.msra.mxu0 0.0
        %350 = vmatprep.subr.mxu0 0.0
        %351 = vmatpush1.msra.mxu0 0.0
        %352 = vmatprep.subr.mxu0 0.0
        %353 = vmatpush1.msra.mxu0 0.0
        %354 = vmatprep.subr.mxu0 0.0
        %355 = vmatpush1.msra.mxu0 0.0
        %356 = vmatprep.subr.mxu0 0.0
        %357 = vmatpush1.msra.mxu0 0.0
        %358 = vmatprep.subr.mxu0 0.0
        %359 = vmatpush1.msra.mxu0 0.0
        %360 = vmatprep.subr.mxu0 0.0
        %361 = vmatpush1.msra.mxu0 0.0
        %362 = vmatprep.subr.mxu0 0.0
        %363 = vmatpush1.msra.mxu0 0.0
        %364 = vmatprep.subr.mxu0 0.0
        %365 = vmatpush1.msra.mxu0 0.0
        %366 = vmatprep.subr.mxu0 0.0
        %367 = vmatpush1.msra.mxu0 0.0
        %368 = vmatprep.mubr.f32.mxu0 0.0
        %369 = vmatmul.mubr.f32.gmra.mrb[0].mxu0 %v298
        %v370 = vpop.f32.mrb[0].mxu0
        %v371 = vadd.f32 %v295, %v370
        %v372 = vpop.f32.mrb[0].mxu0
        %373 = vdwg.mxu0
        %v374 = vmul.f32 %v371, %v371
        %vm375 = vcmask 113664
        %v376 = vsel %vm375, %v374, 0.0
        %377 = vadd.xlane.f32.xlu0 %v376
        %v378 = vpop.xlane.xlu0 %377
        %v379 = vmax.f32 %v378, 1e-24
        %v380 = vrsqrt.pop %v379
        %v381 = vmul.f32 %v371, %v380
        %v382 = vmax.f32 %v381, 0.0
        %383 = vmatprep.subr.mxu0 0.0
        %384 = vmatpush1.msra.mxu0 %v382
        %385 = vmatprep.subr.mxu0 0.0
        %386 = vmatpush1.msra.mxu0 0.0
        %387 = vmatprep.subr.mxu0 0.0
        %388 = vmatpush1.msra.mxu0 0.0
        %389 = vmatprep.subr.mxu0 0.0
        %390 = vmatpush1.msra.mxu0 0.0
        %391 = vmatprep.subr.mxu0 0.0
        %392 = vmatpush1.msra.mxu0 0.0
        %393 = vmatprep.subr.mxu0 0.0
        %394 = vmatpush1.msra.mxu0 0.0
        %395 = vmatprep.subr.mxu0 0.0
        %396 = vmatpush1.msra.mxu0 0.0
        %397 = vmatprep.subr.mxu0 0.0
        %398 = vmatpush1.msra.mxu0 0.0
        %399 = vmatprep.subr.mxu0 0.0
        %400 = vmatpush1.msra.mxu0 0.0
        %401 = vmatprep.subr.mxu0 0.0
        %402 = vmatpush1.msra.mxu0 0.0
        %403 = vmatprep.subr.mxu0 0.0
        %404 = vmatpush1.msra.mxu0 0.0
        %405 = vmatprep.subr.mxu0 0.0
        %406 = vmatpush1.msra.mxu0 0.0
        %407 = vmatprep.subr.mxu0 0.0
        %408 = vmatpush1.msra.mxu0 0.0
        %409 = vmatprep.subr.mxu0 0.0
        %410 = vmatpush1.msra.mxu0 0.0
        %411 = vmatprep.subr.mxu0 0.0
        %412 = vmatpush1.msra.mxu0 0.0
        %413 = vmatprep.subr.mxu0 0.0
        %414 = vmatpush1.msra.mxu0 0.0
        %415 = vmatprep.subr.mxu0 0.0
        %416 = vmatpush1.msra.mxu0 0.0
        %417 = vmatprep.subr.mxu0 0.0
        %418 = vmatpush1.msra.mxu0 0.0
        %419 = vmatprep.subr.mxu0 0.0
        %420 = vmatpush1.msra.mxu0 0.0
        %421 = vmatprep.subr.mxu0 0.0
        %422 = vmatpush1.msra.mxu0 0.0
        %423 = vmatprep.subr.mxu0 0.0
        %424 = vmatpush1.msra.mxu0 0.0
        %425 = vmatprep.subr.mxu0 0.0
        %426 = vmatpush1.msra.mxu0 0.0
        %427 = vmatprep.subr.mxu0 0.0
        %428 = vmatpush1.msra.mxu0 0.0
        %429 = vmatprep.subr.mxu0 0.0
        %430 = vmatpush1.msra.mxu0 0.0
        %431 = vmatprep.subr.mxu0 0.0
        %432 = vmatpush1.msra.mxu0 0.0
        %433 = vmatprep.subr.mxu0 0.0
        %434 = vmatpush1.msra.mxu0 0.0
        %435 = vmatprep.subr.mxu0 0.0
        %436 = vmatpush1.msra.mxu0 0.0
        %437 = vmatprep.subr.mxu0 0.0
        %438 = vmatpush1.msra.mxu0 0.0
        %439 = vmatprep.subr.mxu0 0.0
        %440 = vmatpush1.msra.mxu0 0.0
        %441 = vmatprep.subr.mxu0 0.0
        %442 = vmatpush1.msra.mxu0 0.0
        %443 = vmatprep.subr.mxu0 0.0
        %444 = vmatpush1.msra.mxu0 0.0
        %445 = vmatprep.subr.mxu0 0.0
        %446 = vmatpush1.msra.mxu0 0.0
        %447 = vmatprep.mubr.f32.mxu0 0.0
        %448 = vmatmul.mubr.f32.gmra.mrb[0].mxu0 %v220
        %v449 = vpop.f32.mrb[0].mxu0
        %v450 = vadd.f32 0.0, %v449
        %v451 = vpop.f32.mrb[0].mxu0
        %452 = vdwg.mxu0
        %v453 = vlaneseq
        %v454 = vshrl.u32 %v453, 7
        %v455 = vsub.s32 0, %v454
        %v456 = vrot.slane %v204, %v455
        %v458 = vsel %vm375, %v450, 0
        %vm460 = vcmask 1045504
        %v462 = vsel %vm460, %v203, 0
        %464 = vmatprep.subr.mxu0 0.0
        %465 = vmatpush1.msra.mxu0 %v202
        %466 = vmatprep.subr.mxu0 0.0
        %467 = vmatpush1.msra.mxu0 %v462
        %468 = vmatprep.subr.mxu0 0.0
        %469 = vmatpush1.msra.mxu0 0.0
        %470 = vmatprep.subr.mxu0 0.0
        %471 = vmatpush1.msra.mxu0 0.0
        %472 = vmatprep.subr.mxu0 0.0
        %473 = vmatpush1.msra.mxu0 0.0
        %474 = vmatprep.subr.mxu0 0.0
        %475 = vmatpush1.msra.mxu0 0.0
        %476 = vmatprep.subr.mxu0 0.0
        %477 = vmatpush1.msra.mxu0 0.0
        %478 = vmatprep.subr.mxu0 0.0
        %479 = vmatpush1.msra.mxu0 0.0
        %480 = vmatprep.subr.mxu0 0.0
        %481 = vmatpush1.msra.mxu0 0.0
        %482 = vmatprep.subr.mxu0 0.0
        %483 = vmatpush1.msra.mxu0 0.0
        %484 = vmatprep.subr.mxu0 0.0
        %485 = vmatpush1.msra.mxu0 0.0
        %486 = vmatprep.subr.mxu0 0.0
        %487 = vmatpush1.msra.mxu0 0.0
        %488 = vmatprep.subr.mxu0 0.0
        %489 = vmatpush1.msra.mxu0 0.0
        %490 = vmatprep.subr.mxu0 0.0
        %491 = vmatpush1.msra.mxu0 0.0
        %492 = vmatprep.subr.mxu0 0.0
        %493 = vmatpush1.msra.mxu0 0.0
        %494 = vmatprep.subr.mxu0 0.0
        %495 = vmatpush1.msra.mxu0 0.0
        %496 = vmatprep.subr.mxu0 0.0
        %497 = vmatpush1.msra.mxu0 0.0
        %498 = vmatprep.subr.mxu0 0.0
        %499 = vmatpush1.msra.mxu0 0.0
        %500 = vmatprep.subr.mxu0 0.0
        %501 = vmatpush1.msra.mxu0 0.0
        %502 = vmatprep.subr.mxu0 0.0
        %503 = vmatpush1.msra.mxu0 0.0
        %504 = vmatprep.subr.mxu0 0.0
        %505 = vmatpush1.msra.mxu0 0.0
        %506 = vmatprep.subr.mxu0 0.0
        %507 = vmatpush1.msra.mxu0 0.0
        %508 = vmatprep.subr.mxu0 0.0
        %509 = vmatpush1.msra.mxu0 0.0
        %510 = vmatprep.subr.mxu0 0.0
        %511 = vmatpush1.msra.mxu0 0.0
        %512 = vmatprep.subr.mxu0 0.0
        %513 = vmatpush1.msra.mxu0 0.0
        %514 = vmatprep.subr.mxu0 0.0
        %515 = vmatpush1.msra.mxu0 0.0
        %516 = vmatprep.subr.mxu0 0.0
        %517 = vmatpush1.msra.mxu0 0.0
        %518 = vmatprep.subr.mxu0 0.0
        %519 = vmatpush1.msra.mxu0 0.0
        %520 = vmatprep.subr.mxu0 0.0
        %521 = vmatpush1.msra.mxu0 0.0
        %522 = vmatprep.subr.mxu0 0.0
        %523 = vmatpush1.msra.mxu0 0.0
        %524 = vmatprep.subr.mxu0 0.0
        %525 = vmatpush1.msra.mxu0 0.0
        %526 = vmatprep.subr.mxu0 0.0
        %527 = vmatpush1.msra.mxu0 0.0
        %528 = vmatprep.mubr.f32.mxu0 0.0
        %529 = vmatmul.mubr.f32.gmra.mrb[0].mxu0 %v458
        %v530 = vpop.f32.mrb[0].mxu0
        %v531 = vadd.f32 %v456, %v530
        %v532 = vpop.f32.mrb[0].mxu0
        %533 = vdwg.mxu0
        %v534 = vmul.f32 %v531, %v531
        %v535 = vsel %vm375, %v534, 0.0
        %536 = vadd.xlane.f32.xlu0 %v535
        %v537 = vpop.xlane.xlu0 %536
        %v538 = vmax.f32 %v537, 1e-24
        %v539 = vrsqrt.pop %v538
        %v540 = vmul.f32 %v531, %v539
        %v541 = vmax.f32 %v540, 0.0
        %543 = vrot.lane.b32.xlu0 %v534, 114
        %v544 = vpop.permute.xlu0 %543
        %v546 = vsel %vm375, %v544, 0.0
        %547 = vadd.xlane.f32.xlu0 %v546
        %v548 = vpop.xlane.xlu0 %547
        %v549 = vmax.f32 %v548, 1e-24
        %v550 = vrsqrt.pop %v549
        %v551 = vmul.f32 %v531, %v550
        %v552 = vmax.f32 %v551, 0.0
        %vm553 = vcmask 228464
        %v554 = vsel %vm553, %v552, -inf
        %555 = vmax.xlane.f32.xlu0 %v554
        %v556 = vpop.xlane.xlu0 %555
        %v557 = vsub.f32 %v552, %v556
        %v558 = vmul.f32 %v557, 1.442695
        %v559 = vpow.pop %v558
        %561 = vrot.lane.b32.xlu0 %v559, 114
        %v562 = vpop.permute.xlu0 %561
        %v564 = vsel %vm375, %v562, 0.0
        %565 = vadd.xlane.f32.xlu0 %v564
        %v566 = vpop.xlane.xlu0 %565
        %v567 = vrcp.pop %v566
        %v568 = vmul.f32 %v559, %v567
        %570 = vrot.lane.b32.xlu0 %v568, 114
        %v571 = vpop.permute.xlu0 %570
        %573 = vxpose.xlu0.b32.start [1/16] %v571, 128
        %574 = vxpose.xlu0.b32.cont [2/16] 0.0, 128
        %575 = vxpose.xlu0.b32.cont [3/16] 0.0, 128
        %576 = vxpose.xlu0.b32.cont [4/16] 0.0, 128
        %577 = vxpose.xlu0.b32.cont [5/16] 0.0, 128
        %578 = vxpose.xlu0.b32.cont [6/16] 0.0, 128
        %579 = vxpose.xlu0.b32.cont [7/16] 0.0, 128
        %580 = vxpose.xlu0.b32.cont [8/16] 0.0, 128
        %581 = vxpose.xlu0.b32.cont [9/16] 0.0, 128
        %582 = vxpose.xlu0.b32.cont [10/16] 0.0, 128
        %583 = vxpose.xlu0.b32.cont [11/16] 0.0, 128
        %584 = vxpose.xlu0.b32.cont [12/16] 0.0, 128
        %585 = vxpose.xlu0.b32.cont [13/16] 0.0, 128
        %586 = vxpose.xlu0.b32.cont [14/16] 0.0, 128
        %587 = vxpose.xlu0.b32.cont [15/16] 0.0, 128
        %588 = vxpose.xlu0.b32.end [16/16] 0.0, 128
        %v589 = vpop.trf.xlu0
        %v590 = vpop.trf.xlu0
        %v591 = vpop.trf.xlu0
        %v592 = vpop.trf.xlu0
        %v593 = vpop.trf.xlu0
        %v594 = vpop.trf.xlu0
        %v595 = vpop.trf.xlu0
        %v596 = vpop.trf.xlu0
        %v597 = vpop.trf.xlu0
        %v598 = vpop.trf.xlu0
        %v599 = vpop.trf.xlu0
        %v600 = vpop.trf.xlu0
        %v601 = vpop.trf.xlu0
        %v602 = vpop.trf.xlu0
        %v603 = vpop.trf.xlu0
        %v604 = vpop.trf.xlu0
        %v606 = vsel %vm218, %v589, 0
        %v609 = vsel %vm218, %v590, 0
        %611 = vmatprep.subr.mxu0 0.0
        %612 = vmatpush1.msra.mxu0 %v541
        %613 = vmatprep.subr.mxu0 0.0
        %614 = vmatpush1.msra.mxu0 0.0
        %615 = vmatprep.subr.mxu0 0.0
        %616 = vmatpush1.msra.mxu0 0.0
        %617 = vmatprep.subr.mxu0 0.0
        %618 = vmatpush1.msra.mxu0 0.0
        %619 = vmatprep.subr.mxu0 0.0
        %620 = vmatpush1.msra.mxu0 0.0
        %621 = vmatprep.subr.mxu0 0.0
        %622 = vmatpush1.msra.mxu0 0.0
        %623 = vmatprep.subr.mxu0 0.0
        %624 = vmatpush1.msra.mxu0 0.0
        %625 = vmatprep.subr.mxu0 0.0
        %626 = vmatpush1.msra.mxu0 0.0
        %627 = vmatprep.subr.mxu0 0.0
        %628 = vmatpush1.msra.mxu0 0.0
        %629 = vmatprep.subr.mxu0 0.0
        %630 = vmatpush1.msra.mxu0 0.0
        %631 = vmatprep.subr.mxu0 0.0
        %632 = vmatpush1.msra.mxu0 0.0
        %633 = vmatprep.subr.mxu0 0.0
        %634 = vmatpush1.msra.mxu0 0.0
        %635 = vmatprep.subr.mxu0 0.0
        %636 = vmatpush1.msra.mxu0 0.0
        %637 = vmatprep.subr.mxu0 0.0
        %638 = vmatpush1.msra.mxu0 0.0
        %639 = vmatprep.subr.mxu0 0.0
        %640 = vmatpush1.msra.mxu0 0.0
        %641 = vmatprep.subr.mxu0 0.0
        %642 = vmatpush1.msra.mxu0 0.0
        %643 = vmatprep.subr.mxu0 0.0
        %644 = vmatpush1.msra.mxu0 0.0
        %645 = vmatprep.subr.mxu0 0.0
        %646 = vmatpush1.msra.mxu0 0.0
        %647 = vmatprep.subr.mxu0 0.0
        %648 = vmatpush1.msra.mxu0 0.0
        %649 = vmatprep.subr.mxu0 0.0
        %650 = vmatpush1.msra.mxu0 0.0
        %651 = vmatprep.subr.mxu0 0.0
        %652 = vmatpush1.msra.mxu0 0.0
        %653 = vmatprep.subr.mxu0 0.0
        %654 = vmatpush1.msra.mxu0 0.0
        %655 = vmatprep.subr.mxu0 0.0
        %656 = vmatpush1.msra.mxu0 0.0
        %657 = vmatprep.subr.mxu0 0.0
        %658 = vmatpush1.msra.mxu0 0.0
        %659 = vmatprep.subr.mxu0 0.0
        %660 = vmatpush1.msra.mxu0 0.0
        %661 = vmatprep.subr.mxu0 0.0
        %662 = vmatpush1.msra.mxu0 0.0
        %663 = vmatprep.subr.mxu0 0.0
        %664 = vmatpush1.msra.mxu0 0.0
        %665 = vmatprep.subr.mxu0 0.0
        %666 = vmatpush1.msra.mxu0 0.0
        %667 = vmatprep.subr.mxu0 0.0
        %668 = vmatpush1.msra.mxu0 0.0
        %669 = vmatprep.subr.mxu0 0.0
        %670 = vmatpush1.msra.mxu0 0.0
        %671 = vmatprep.subr.mxu0 0.0
        %672 = vmatpush1.msra.mxu0 0.0
        %673 = vmatprep.subr.mxu0 0.0
        %674 = vmatpush1.msra.mxu0 0.0
        %675 = vmatprep.mubr.f32.mxu0 0.0
        %676 = vmatmul.mubr.f32.gmra.mrb[0].mxu0 %v606
        %v677 = vpop.f32.mrb[0].mxu0
        %v678 = vadd.f32 0.0, %v677
        %v679 = vpop.f32.mrb[0].mxu0
        %680 = vmatprep.mubr.f32.mxu0 0.0
        %681 = vmatmul.mubr.f32.gmra.mrb[0].mxu0 %v609
        %v682 = vpop.f32.mrb[0].mxu0
        %v683 = vadd.f32 0.0, %v682
        %v684 = vpop.f32.mrb[0].mxu0
        %685 = vdwg.mxu0
        %686 = vmatprep.subr.mxu0 0.0
        %687 = vmatpush1.msra.mxu0 %v199
        %688 = vmatprep.subr.mxu0 0.0
        %689 = vmatpush1.msra.mxu0 0.0
        %690 = vmatprep.subr.mxu0 0.0
        %691 = vmatpush1.msra.mxu0 0.0
        %692 = vmatprep.subr.mxu0 0.0
        %693 = vmatpush1.msra.mxu0 0.0
        %694 = vmatprep.subr.mxu0 0.0
        %695 = vmatpush1.msra.mxu0 0.0
        %696 = vmatprep.subr.mxu0 0.0
        %697 = vmatpush1.msra.mxu0 0.0
        %698 = vmatprep.subr.mxu0 0.0
        %699 = vmatpush1.msra.mxu0 0.0
        %700 = vmatprep.subr.mxu0 0.0
        %701 = vmatpush1.msra.mxu0 0.0
        %702 = vmatprep.subr.mxu0 0.0
        %703 = vmatpush1.msra.mxu0 0.0
        %704 = vmatprep.subr.mxu0 0.0
        %705 = vmatpush1.msra.mxu0 0.0
        %706 = vmatprep.subr.mxu0 0.0
        %707 = vmatpush1.msra.mxu0 0.0
        %708 = vmatprep.subr.mxu0 0.0
        %709 = vmatpush1.msra.mxu0 0.0
        %710 = vmatprep.subr.mxu0 0.0
        %711 = vmatpush1.msra.mxu0 0.0
        %712 = vmatprep.subr.mxu0 0.0
        %713 = vmatpush1.msra.mxu0 0.0
        %714 = vmatprep.subr.mxu0 0.0
        %715 = vmatpush1.msra.mxu0 0.0
        %716 = vmatprep.subr.mxu0 0.0
        %717 = vmatpush1.msra.mxu0 0.0
        %718 = vmatprep.subr.mxu0 0.0
        %719 = vmatpush1.msra.mxu0 0.0
        %720 = vmatprep.subr.mxu0 0.0
        %721 = vmatpush1.msra.mxu0 0.0
        %722 = vmatprep.subr.mxu0 0.0
        %723 = vmatpush1.msra.mxu0 0.0
        %724 = vmatprep.subr.mxu0 0.0
        %725 = vmatpush1.msra.mxu0 0.0
        %726 = vmatprep.subr.mxu0 0.0
        %727 = vmatpush1.msra.mxu0 0.0
        %728 = vmatprep.subr.mxu0 0.0
        %729 = vmatpush1.msra.mxu0 0.0
        %730 = vmatprep.subr.mxu0 0.0
        %731 = vmatpush1.msra.mxu0 0.0
        %732 = vmatprep.subr.mxu0 0.0
        %733 = vmatpush1.msra.mxu0 0.0
        %734 = vmatprep.subr.mxu0 0.0
        %735 = vmatpush1.msra.mxu0 0.0
        %736 = vmatprep.subr.mxu0 0.0
        %737 = vmatpush1.msra.mxu0 0.0
        %738 = vmatprep.subr.mxu0 0.0
        %739 = vmatpush1.msra.mxu0 0.0
        %740 = vmatprep.subr.mxu0 0.0
        %741 = vmatpush1.msra.mxu0 0.0
        %742 = vmatprep.subr.mxu0 0.0
        %743 = vmatpush1.msra.mxu0 0.0
        %744 = vmatprep.subr.mxu0 0.0
        %745 = vmatpush1.msra.mxu0 0.0
        %746 = vmatprep.subr.mxu0 0.0
        %747 = vmatpush1.msra.mxu0 0.0
        %748 = vmatprep.subr.mxu0 0.0
        %749 = vmatpush1.msra.mxu0 0.0
        %750 = vmatprep.mubr.f32.mxu0 0.0
        %751 = vmatmul.mubr.f32.gmra.mrb[0].mxu0 %v606
        %v752 = vpop.f32.mrb[0].mxu0
        %v753 = vadd.f32 0.0, %v752
        %v754 = vpop.f32.mrb[0].mxu0
        %755 = vmatprep.mubr.f32.mxu0 0.0
        %756 = vmatmul.mubr.f32.gmra.mrb[0].mxu0 %v609
        %v757 = vpop.f32.mrb[0].mxu0
        %v758 = vadd.f32 0.0, %v757
        %v759 = vpop.f32.mrb[0].mxu0
        %760 = vdwg.mxu0
        %v762 = vsel %vm218, %v753, 0
        %v765 = vsel %vm218, %v758, 0
        %767 = vmatprep.subr.mxu0 0.0
        %768 = vmatpush1.msra.mxu0 %v571
        %769 = vmatprep.subr.mxu0 0.0
        %770 = vmatpush1.msra.mxu0 0.0
        %771 = vmatprep.subr.mxu0 0.0
        %772 = vmatpush1.msra.mxu0 0.0
        %773 = vmatprep.subr.mxu0 0.0
        %774 = vmatpush1.msra.mxu0 0.0
        %775 = vmatprep.subr.mxu0 0.0
        %776 = vmatpush1.msra.mxu0 0.0
        %777 = vmatprep.subr.mxu0 0.0
        %778 = vmatpush1.msra.mxu0 0.0
        %779 = vmatprep.subr.mxu0 0.0
        %780 = vmatpush1.msra.mxu0 0.0
        %781 = vmatprep.subr.mxu0 0.0
        %782 = vmatpush1.msra.mxu0 0.0
        %783 = vmatprep.subr.mxu0 0.0
        %784 = vmatpush1.msra.mxu0 0.0
        %785 = vmatprep.subr.mxu0 0.0
        %786 = vmatpush1.msra.mxu0 0.0
        %787 = vmatprep.subr.mxu0 0.0
        %788 = vmatpush1.msra.mxu0 0.0
        %789 = vmatprep.subr.mxu0 0.0
        %790 = vmatpush1.msra.mxu0 0.0
        %791 = vmatprep.subr.mxu0 0.0
        %792 = vmatpush1.msra.mxu0 0.0
        %793 = vmatprep.subr.mxu0 0.0
        %794 = vmatpush1.msra.mxu0 0.0
        %795 = vmatprep.subr.mxu0 0.0
        %796 = vmatpush1.msra.mxu0 0.0
        %797 = vmatprep.subr.mxu0 0.0
        %798 = vmatpush1.msra.mxu0 0.0
        %799 = vmatprep.subr.mxu0 0.0
        %800 = vmatpush1.msra.mxu0 0.0
        %801 = vmatprep.subr.mxu0 0.0
        %802 = vmatpush1.msra.mxu0 0.0
        %803 = vmatprep.subr.mxu0 0.0
        %804 = vmatpush1.msra.mxu0 0.0
        %805 = vmatprep.subr.mxu0 0.0
        %806 = vmatpush1.msra.mxu0 0.0
        %807 = vmatprep.subr.mxu0 0.0
        %808 = vmatpush1.msra.mxu0 0.0
        %809 = vmatprep.subr.mxu0 0.0
        %810 = vmatpush1.msra.mxu0 0.0
        %811 = vmatprep.subr.mxu0 0.0
        %812 = vmatpush1.msra.mxu0 0.0
        %813 = vmatprep.subr.mxu0 0.0
        %814 = vmatpush1.msra.mxu0 0.0
        %815 = vmatprep.subr.mxu0 0.0
        %816 = vmatpush1.msra.mxu0 0.0
        %817 = vmatprep.subr.mxu0 0.0
        %818 = vmatpush1.msra.mxu0 0.0
        %819 = vmatprep.subr.mxu0 0.0
        %820 = vmatpush1.msra.mxu0 0.0
        %821 = vmatprep.subr.mxu0 0.0
        %822 = vmatpush1.msra.mxu0 0.0
        %823 = vmatprep.subr.mxu0 0.0
        %824 = vmatpush1.msra.mxu0 0.0
        %825 = vmatprep.subr.mxu0 0.0
        %826 = vmatpush1.msra.mxu0 0.0
        %827 = vmatprep.subr.mxu0 0.0
        %828 = vmatpush1.msra.mxu0 0.0
        %829 = vmatprep.subr.mxu0 0.0
        %830 = vmatpush1.msra.mxu0 0.0
        %831 = vmatprep.mubr.f32.mxu0 0.0
        %832 = vmatmul.mubr.f32.gmra.mrb[0].mxu0 %v762
        %v833 = vpop.f32.mrb[0].mxu0
        %v834 = vadd.f32 0.0, %v833
        %v835 = vpop.f32.mrb[0].mxu0
        %836 = vmatprep.mubr.f32.mxu0 0.0
        %837 = vmatmul.mubr.f32.gmra.mrb[0].mxu0 %v765
        %v838 = vpop.f32.mrb[0].mxu0
        %v839 = vadd.f32 0.0, %v838
        %v840 = vpop.f32.mrb[0].mxu0
        %841 = vdwg.mxu0
        %v843 = vsel %vm375, %v834, 0
        %v846 = vsel %vm375, %v839, 0
        %v849 = vsel %vm460, %v683, 0
        %851 = vmatprep.subr.mxu0 0.0
        %852 = vmatpush1.msra.mxu0 %v678
        %853 = vmatprep.subr.mxu0 0.0
        %854 = vmatpush1.msra.mxu0 %v849
        %855 = vmatprep.subr.mxu0 0.0
        %856 = vmatpush1.msra.mxu0 0.0
        %857 = vmatprep.subr.mxu0 0.0
        %858 = vmatpush1.msra.mxu0 0.0
        %859 = vmatprep.subr.mxu0 0.0
        %860 = vmatpush1.msra.mxu0 0.0
        %861 = vmatprep.subr.mxu0 0.0
        %862 = vmatpush1.msra.mxu0 0.0
        %863 = vmatprep.subr.mxu0 0.0
        %864 = vmatpush1.msra.mxu0 0.0
        %865 = vmatprep.subr.mxu0 0.0
        %866 = vmatpush1.msra.mxu0 0.0
        %867 = vmatprep.subr.mxu0 0.0
        %868 = vmatpush1.msra.mxu0 0.0
        %869 = vmatprep.subr.mxu0 0.0
        %870 = vmatpush1.msra.mxu0 0.0
        %871 = vmatprep.subr.mxu0 0.0
        %872 = vmatpush1.msra.mxu0 0.0
        %873 = vmatprep.subr.mxu0 0.0
        %874 = vmatpush1.msra.mxu0 0.0
        %875 = vmatprep.subr.mxu0 0.0
        %876 = vmatpush1.msra.mxu0 0.0
        %877 = vmatprep.subr.mxu0 0.0
        %878 = vmatpush1.msra.mxu0 0.0
        %879 = vmatprep.subr.mxu0 0.0
        %880 = vmatpush1.msra.mxu0 0.0
        %881 = vmatprep.subr.mxu0 0.0
        %882 = vmatpush1.msra.mxu0 0.0
        %883 = vmatprep.subr.mxu0 0.0
        %884 = vmatpush1.msra.mxu0 0.0
        %885 = vmatprep.subr.mxu0 0.0
        %886 = vmatpush1.msra.mxu0 0.0
        %887 = vmatprep.subr.mxu0 0.0
        %888 = vmatpush1.msra.mxu0 0.0
        %889 = vmatprep.subr.mxu0 0.0
        %890 = vmatpush1.msra.mxu0 0.0
        %891 = vmatprep.subr.mxu0 0.0
        %892 = vmatpush1.msra.mxu0 0.0
        %893 = vmatprep.subr.mxu0 0.0
        %894 = vmatpush1.msra.mxu0 0.0
        %895 = vmatprep.subr.mxu0 0.0
        %896 = vmatpush1.msra.mxu0 0.0
        %897 = vmatprep.subr.mxu0 0.0
        %898 = vmatpush1.msra.mxu0 0.0
        %899 = vmatprep.subr.mxu0 0.0
        %900 = vmatpush1.msra.mxu0 0.0
        %901 = vmatprep.subr.mxu0 0.0
        %902 = vmatpush1.msra.mxu0 0.0
        %903 = vmatprep.subr.mxu0 0.0
        %904 = vmatpush1.msra.mxu0 0.0
        %905 = vmatprep.subr.mxu0 0.0
        %906 = vmatpush1.msra.mxu0 0.0
        %907 = vmatprep.subr.mxu0 0.0
        %908 = vmatpush1.msra.mxu0 0.0
        %909 = vmatprep.subr.mxu0 0.0
        %910 = vmatpush1.msra.mxu0 0.0
        %911 = vmatprep.subr.mxu0 0.0
        %912 = vmatpush1.msra.mxu0 0.0
        %913 = vmatprep.subr.mxu0 0.0
        %914 = vmatpush1.msra.mxu0 0.0
        %915 = vmatprep.mubr.f32.mxu0 0.0
        %916 = vmatmul.mubr.f32.gmra.mrb[0].mxu0 %v843
        %v917 = vpop.f32.mrb[0].mxu0
        %v918 = vadd.f32 0.0, %v917
        %v919 = vpop.f32.mrb[0].mxu0
        %920 = vmatprep.mubr.f32.mxu0 0.0
        %921 = vmatmul.mubr.f32.gmra.mrb[0].mxu0 %v846
        %v922 = vpop.f32.mrb[0].mxu0
        %v923 = vadd.f32 0.0, %v922
        %v924 = vpop.f32.mrb[0].mxu0
        %925 = vdwg.mxu0
        %v926 = vlaneseq
        %v927 = vshrl.u32 %v926, 7
        %v928 = vsub.s32 0, %v927
        %v929 = vrot.slane %v207, %v928
        %v931 = vsel %vm375, %v918, 0
        %v934 = vsel %vm375, %v923, 0
        %v937 = vsel %vm460, %v206, 0
        %939 = vmatprep.subr.mxu0 0.0
        %940 = vmatpush1.msra.mxu0 %v205
        %941 = vmatprep.subr.mxu0 0.0
        %942 = vmatpush1.msra.mxu0 %v937
        %943 = vmatprep.subr.mxu0 0.0
        %944 = vmatpush1.msra.mxu0 0.0
        %945 = vmatprep.subr.mxu0 0.0
        %946 = vmatpush1.msra.mxu0 0.0
        %947 = vmatprep.subr.mxu0 0.0
        %948 = vmatpush1.msra.mxu0 0.0
        %949 = vmatprep.subr.mxu0 0.0
        %950 = vmatpush1.msra.mxu0 0.0
        %951 = vmatprep.subr.mxu0 0.0
        %952 = vmatpush1.msra.mxu0 0.0
        %953 = vmatprep.subr.mxu0 0.0
        %954 = vmatpush1.msra.mxu0 0.0
        %955 = vmatprep.subr.mxu0 0.0
        %956 = vmatpush1.msra.mxu0 0.0
        %957 = vmatprep.subr.mxu0 0.0
        %958 = vmatpush1.msra.mxu0 0.0
        %959 = vmatprep.subr.mxu0 0.0
        %960 = vmatpush1.msra.mxu0 0.0
        %961 = vmatprep.subr.mxu0 0.0
        %962 = vmatpush1.msra.mxu0 0.0
        %963 = vmatprep.subr.mxu0 0.0
        %964 = vmatpush1.msra.mxu0 0.0
        %965 = vmatprep.subr.mxu0 0.0
        %966 = vmatpush1.msra.mxu0 0.0
        %967 = vmatprep.subr.mxu0 0.0
        %968 = vmatpush1.msra.mxu0 0.0
        %969 = vmatprep.subr.mxu0 0.0
        %970 = vmatpush1.msra.mxu0 0.0
        %971 = vmatprep.subr.mxu0 0.0
        %972 = vmatpush1.msra.mxu0 0.0
        %973 = vmatprep.subr.mxu0 0.0
        %974 = vmatpush1.msra.mxu0 0.0
        %975 = vmatprep.subr.mxu0 0.0
        %976 = vmatpush1.msra.mxu0 0.0
        %977 = vmatprep.subr.mxu0 0.0
        %978 = vmatpush1.msra.mxu0 0.0
        %979 = vmatprep.subr.mxu0 0.0
        %980 = vmatpush1.msra.mxu0 0.0
        %981 = vmatprep.subr.mxu0 0.0
        %982 = vmatpush1.msra.mxu0 0.0
        %983 = vmatprep.subr.mxu0 0.0
        %984 = vmatpush1.msra.mxu0 0.0
        %985 = vmatprep.subr.mxu0 0.0
        %986 = vmatpush1.msra.mxu0 0.0
        %987 = vmatprep.subr.mxu0 0.0
        %988 = vmatpush1.msra.mxu0 0.0
        %989 = vmatprep.subr.mxu0 0.0
        %990 = vmatpush1.msra.mxu0 0.0
        %991 = vmatprep.subr.mxu0 0.0
        %992 = vmatpush1.msra.mxu0 0.0
        %993 = vmatprep.subr.mxu0 0.0
        %994 = vmatpush1.msra.mxu0 0.0
        %995 = vmatprep.subr.mxu0 0.0
        %996 = vmatpush1.msra.mxu0 0.0
        %997 = vmatprep.subr.mxu0 0.0
        %998 = vmatpush1.msra.mxu0 0.0
        %999 = vmatprep.subr.mxu0 0.0
        %1000 = vmatpush1.msra.mxu0 0.0
        %1001 = vmatprep.subr.mxu0 0.0
        %1002 = vmatpush1.msra.mxu0 0.0
        %1003 = vmatprep.mubr.f32.mxu0 0.0
        %1004 = vmatmul.mubr.f32.gmra.mrb[0].mxu0 %v931
        %v1005 = vpop.f32.mrb[0].mxu0
        %v1006 = vadd.f32 %v929, %v1005
        %v1007 = vpop.f32.mrb[0].mxu0
        %1008 = vmatprep.mubr.f32.mxu0 0.0
        %1009 = vmatmul.mubr.f32.gmra.mrb[0].mxu0 %v934
        %v1010 = vpop.f32.mrb[0].mxu0
        %v1011 = vadd.f32 %v929, %v1010
        %v1012 = vpop.f32.mrb[0].mxu0
        %1013 = vdwg.mxu0
        %v1014 = vmul.f32 %v1006, %v1006
        %v1015 = vmul.f32 %v1011, %v1011
        %vm1016 = vcmask 228352
        %v1017 = vsel %vm1016, %v1014, 0.0
        %1018 = vadd.xlane.f32.xlu0 %v1017
        %v1019 = vpop.xlane.xlu0 %1018
        %vm1020 = vcmask 226304
        %v1021 = vsel %vm1020, %v1015, 0.0
        %1022 = vadd.xlane.f32.xlu0 %v1021
        %v1023 = vpop.xlane.xlu0 %1022
        %v1024 = vmax.f32 %v1019, 1e-24
        %v1025 = vmax.f32 %v1023, 1e-24
        %v1026 = vrsqrt.pop %v1024
        %v1027 = vrsqrt.pop %v1025
        %v1028 = vmul.f32 %v1006, %v1026
        %v1029 = vmul.f32 %v1011, %v1027
        %v1030 = vmax.f32 %v1028, 0.0
        %v1031 = vmax.f32 %v1029, 0.0
        %v1033 = vsel %vm460, %v1031, 0
        %1035 = vmatprep.subr.mxu0 0.0
        %1036 = vmatpush1.msra.mxu0 %v1030
        %1037 = vmatprep.subr.mxu0 0.0
        %1038 = vmatpush1.msra.mxu0 %v1033
        %1039 = vmatprep.subr.mxu0 0.0
        %1040 = vmatpush1.msra.mxu0 0.0
        %1041 = vmatprep.subr.mxu0 0.0
        %1042 = vmatpush1.msra.mxu0 0.0
        %1043 = vmatprep.subr.mxu0 0.0
        %1044 = vmatpush1.msra.mxu0 0.0
        %1045 = vmatprep.subr.mxu0 0.0
        %1046 = vmatpush1.msra.mxu0 0.0
        %1047 = vmatprep.subr.mxu0 0.0
        %1048 = vmatpush1.msra.mxu0 0.0
        %1049 = vmatprep.subr.mxu0 0.0
        %1050 = vmatpush1.msra.mxu0 0.0
        %1051 = vmatprep.subr.mxu0 0.0
        %1052 = vmatpush1.msra.mxu0 0.0
        %1053 = vmatprep.subr.mxu0 0.0
        %1054 = vmatpush1.msra.mxu0 0.0
        %1055 = vmatprep.subr.mxu0 0.0
        %1056 = vmatpush1.msra.mxu0 0.0
        %1057 = vmatprep.subr.mxu0 0.0
        %1058 = vmatpush1.msra.mxu0 0.0
        %1059 = vmatprep.subr.mxu0 0.0
        %1060 = vmatpush1.msra.mxu0 0.0
        %1061 = vmatprep.subr.mxu0 0.0
        %1062 = vmatpush1.msra.mxu0 0.0
        %1063 = vmatprep.subr.mxu0 0.0
        %1064 = vmatpush1.msra.mxu0 0.0
        %1065 = vmatprep.subr.mxu0 0.0
        %1066 = vmatpush1.msra.mxu0 0.0
        %1067 = vmatprep.subr.mxu0 0.0
        %1068 = vmatpush1.msra.mxu0 0.0
        %1069 = vmatprep.subr.mxu0 0.0
        %1070 = vmatpush1.msra.mxu0 0.0
        %1071 = vmatprep.subr.mxu0 0.0
        %1072 = vmatpush1.msra.mxu0 0.0
        %1073 = vmatprep.subr.mxu0 0.0
        %1074 = vmatpush1.msra.mxu0 0.0
        %1075 = vmatprep.subr.mxu0 0.0
        %1076 = vmatpush1.msra.mxu0 0.0
        %1077 = vmatprep.subr.mxu0 0.0
        %1078 = vmatpush1.msra.mxu0 0.0
        %1079 = vmatprep.subr.mxu0 0.0
        %1080 = vmatpush1.msra.mxu0 0.0
        %1081 = vmatprep.subr.mxu0 0.0
        %1082 = vmatpush1.msra.mxu0 0.0
        %1083 = vmatprep.subr.mxu0 0.0
        %1084 = vmatpush1.msra.mxu0 0.0
        %1085 = vmatprep.subr.mxu0 0.0
        %1086 = vmatpush1.msra.mxu0 0.0
        %1087 = vmatprep.subr.mxu0 0.0
        %1088 = vmatpush1.msra.mxu0 0.0
        %1089 = vmatprep.subr.mxu0 0.0
        %1090 = vmatpush1.msra.mxu0 0.0
        %1091 = vmatprep.subr.mxu0 0.0
        %1092 = vmatpush1.msra.mxu0 0.0
        %1093 = vmatprep.subr.mxu0 0.0
        %1094 = vmatpush1.msra.mxu0 0.0
        %1095 = vmatprep.subr.mxu0 0.0
        %1096 = vmatpush1.msra.mxu0 0.0
        %1097 = vmatprep.subr.mxu0 0.0
        %1098 = vmatpush1.msra.mxu0 0.0
        %1099 = vmatprep.mubr.f32.mxu0 0.0
        %1100 = vmatmul.mubr.f32.gmra.mrb[0].mxu0 %v843
        %v1101 = vpop.f32.mrb[0].mxu0
        %v1102 = vadd.f32 0.0, %v1101
        %v1103 = vpop.f32.mrb[0].mxu0
        %1104 = vmatprep.mubr.f32.mxu0 0.0
        %1105 = vmatmul.mubr.f32.gmra.mrb[0].mxu0 %v846
        %v1106 = vpop.f32.mrb[0].mxu0
        %v1107 = vadd.f32 0.0, %v1106
        %v1108 = vpop.f32.mrb[0].mxu0
        %1109 = vdwg.mxu0
        %v1110 = vlaneseq
        %v1111 = vshrl.u32 %v1110, 7
        %v1112 = vsub.s32 0, %v1111
        %v1113 = vrot.slane %v212, %v1112
        %v1115 = vsel %vm1016, %v1102, 0
        %v1118 = vsel %vm1016, %v1107, 0
        %vm1120 = vcmask 1043456
        %v1122 = vsel %vm1120, %v211, 0
        %1124 = vmatprep.subr.mxu0 0.0
        %1125 = vmatpush1.msra.mxu0 %v208
        %1126 = vmatprep.subr.mxu0 0.0
        %1127 = vmatpush1.msra.mxu0 %v209
        %1128 = vmatprep.subr.mxu0 0.0
        %1129 = vmatpush1.msra.mxu0 %v210
        %1130 = vmatprep.subr.mxu0 0.0
        %1131 = vmatpush1.msra.mxu0 %v1122
        %1132 = vmatprep.subr.mxu0 0.0
        %1133 = vmatpush1.msra.mxu0 0.0
        %1134 = vmatprep.subr.mxu0 0.0
        %1135 = vmatpush1.msra.mxu0 0.0
        %1136 = vmatprep.subr.mxu0 0.0
        %1137 = vmatpush1.msra.mxu0 0.0
        %1138 = vmatprep.subr.mxu0 0.0
        %1139 = vmatpush1.msra.mxu0 0.0
        %1140 = vmatprep.subr.mxu0 0.0
        %1141 = vmatpush1.msra.mxu0 0.0
        %1142 = vmatprep.subr.mxu0 0.0
        %1143 = vmatpush1.msra.mxu0 0.0
        %1144 = vmatprep.subr.mxu0 0.0
        %1145 = vmatpush1.msra.mxu0 0.0
        %1146 = vmatprep.subr.mxu0 0.0
        %1147 = vmatpush1.msra.mxu0 0.0
        %1148 = vmatprep.subr.mxu0 0.0
        %1149 = vmatpush1.msra.mxu0 0.0
        %1150 = vmatprep.subr.mxu0 0.0
        %1151 = vmatpush1.msra.mxu0 0.0
        %1152 = vmatprep.subr.mxu0 0.0
        %1153 = vmatpush1.msra.mxu0 0.0
        %1154 = vmatprep.subr.mxu0 0.0
        %1155 = vmatpush1.msra.mxu0 0.0
        %1156 = vmatprep.subr.mxu0 0.0
        %1157 = vmatpush1.msra.mxu0 0.0
        %1158 = vmatprep.subr.mxu0 0.0
        %1159 = vmatpush1.msra.mxu0 0.0
        %1160 = vmatprep.subr.mxu0 0.0
        %1161 = vmatpush1.msra.mxu0 0.0
        %1162 = vmatprep.subr.mxu0 0.0
        %1163 = vmatpush1.msra.mxu0 0.0
        %1164 = vmatprep.subr.mxu0 0.0
        %1165 = vmatpush1.msra.mxu0 0.0
        %1166 = vmatprep.subr.mxu0 0.0
        %1167 = vmatpush1.msra.mxu0 0.0
        %1168 = vmatprep.subr.mxu0 0.0
        %1169 = vmatpush1.msra.mxu0 0.0
        %1170 = vmatprep.subr.mxu0 0.0
        %1171 = vmatpush1.msra.mxu0 0.0
        %1172 = vmatprep.subr.mxu0 0.0
        %1173 = vmatpush1.msra.mxu0 0.0
        %1174 = vmatprep.subr.mxu0 0.0
        %1175 = vmatpush1.msra.mxu0 0.0
        %1176 = vmatprep.subr.mxu0 0.0
        %1177 = vmatpush1.msra.mxu0 0.0
        %1178 = vmatprep.subr.mxu0 0.0
        %1179 = vmatpush1.msra.mxu0 0.0
        %1180 = vmatprep.subr.mxu0 0.0
        %1181 = vmatpush1.msra.mxu0 0.0
        %1182 = vmatprep.subr.mxu0 0.0
        %1183 = vmatpush1.msra.mxu0 0.0
        %1184 = vmatprep.subr.mxu0 0.0
        %1185 = vmatpush1.msra.mxu0 0.0
        %1186 = vmatprep.subr.mxu0 0.0
        %1187 = vmatpush1.msra.mxu0 0.0
        %1188 = vmatprep.mubr.f32.mxu0 0.0
        %1189 = vmatmul.mubr.f32.gmra.mrb[0].mxu0 %v1115
        %v1190 = vpop.f32.mrb[0].mxu0
        %v1191 = vadd.f32 %v1113, %v1190
        %v1192 = vpop.f32.mrb[0].mxu0
        %1193 = vmatprep.mubr.f32.mxu0 0.0
        %1194 = vmatmul.mubr.f32.gmra.mrb[0].mxu0 %v1118
        %v1195 = vpop.f32.mrb[0].mxu0
        %v1196 = vadd.f32 %v1113, %v1195
        %v1197 = vpop.f32.mrb[0].mxu0
        %1198 = vdwg.mxu0
        %v1199 = vmul.f32 %v1191, %v1191
        %v1200 = vmul.f32 %v1196, %v1196
        %v1201 = vsel %vm1016, %v1199, 0.0
        %1202 = vadd.xlane.f32.xlu0 %v1201
        %v1203 = vpop.xlane.xlu0 %1202
        %v1204 = vsel %vm1020, %v1200, 0.0
        %1205 = vadd.xlane.f32.xlu0 %v1204
        %v1206 = vpop.xlane.xlu0 %1205
        %v1207 = vmax.f32 %v1203, 1e-24
        %v1208 = vmax.f32 %v1206, 1e-24
        %v1209 = vrsqrt.pop %v1207
        %v1210 = vrsqrt.pop %v1208
        %v1211 = vmul.f32 %v1191, %v1209
        %v1212 = vmul.f32 %v1196, %v1210
        %v1213 = vmax.f32 %v1211, 0.0
        %v1214 = vmax.f32 %v1212, 0.0
        %v1215 = vadd.f32 %v1199, 0.0
        %v1216 = vadd.f32 %v1200, 0.0
        %v1217 = vmax.f32 %v1215, 1e-24
        %v1218 = vmax.f32 %v1216, 1e-24
        %v1219 = vrsqrt.pop %v1217
        %v1220 = vrsqrt.pop %v1218
        %v1221 = vmul.f32 %v1191, %v1219
        %v1222 = vmul.f32 %v1196, %v1220
        %v1223 = vmax.f32 %v1221, 0.0
        %v1224 = vmax.f32 %v1222, 0.0
        %v1225 = vsub.f32 %v1223, %v1223
        %v1226 = vsub.f32 %v1224, %v1224
        %v1227 = vmul.f32 %v1225, 1.442695
        %v1228 = vpow.pop %v1227
        %v1229 = vmul.f32 %v1226, 1.442695
        %v1230 = vpow.pop %v1229
        %v1231 = vadd.f32 %v1228, 0.0
        %v1232 = vadd.f32 %v1230, 0.0
        %v1233 = vrcp.pop %v1231
        %v1234 = vmul.f32 %v1228, %v1233
        %v1235 = vrcp.pop %v1232
        %v1236 = vmul.f32 %v1230, %v1235
        %1239 = vrot.lane.b32.xlu0 %v1234, 100
        %v1240 = vpop.permute.xlu0 %1239
        %1241 = vrot.lane.b32.xlu0 %v1236, 100
        %v1242 = vpop.permute.xlu0 %1241
        %1245 = vxpose.xlu0.b32.start [1/16] %v1240, 128
        %1246 = vxpose.xlu0.b32.cont [2/16] %v1242, 128
        %1247 = vxpose.xlu0.b32.cont [3/16] 0.0, 128
        %1248 = vxpose.xlu0.b32.cont [4/16] 0.0, 128
        %1249 = vxpose.xlu0.b32.cont [5/16] 0.0, 128
        %1250 = vxpose.xlu0.b32.cont [6/16] 0.0, 128
        %1251 = vxpose.xlu0.b32.cont [7/16] 0.0, 128
        %1252 = vxpose.xlu0.b32.cont [8/16] 0.0, 128
        %1253 = vxpose.xlu0.b32.cont [9/16] 0.0, 128
        %1254 = vxpose.xlu0.b32.cont [10/16] 0.0, 128
        %1255 = vxpose.xlu0.b32.cont [11/16] 0.0, 128
        %1256 = vxpose.xlu0.b32.cont [12/16] 0.0, 128
        %1257 = vxpose.xlu0.b32.cont [13/16] 0.0, 128
        %1258 = vxpose.xlu0.b32.cont [14/16] 0.0, 128
        %1259 = vxpose.xlu0.b32.cont [15/16] 0.0, 128
        %1260 = vxpose.xlu0.b32.end [16/16] 0.0, 128
        %v1261 = vpop.trf.xlu0
        %v1262 = vpop.trf.xlu0
        %v1263 = vpop.trf.xlu0
        %v1264 = vpop.trf.xlu0
        %v1265 = vpop.trf.xlu0
        %v1266 = vpop.trf.xlu0
        %v1267 = vpop.trf.xlu0
        %v1268 = vpop.trf.xlu0
        %v1269 = vpop.trf.xlu0
        %v1270 = vpop.trf.xlu0
        %v1271 = vpop.trf.xlu0
        %v1272 = vpop.trf.xlu0
        %v1273 = vpop.trf.xlu0
        %v1274 = vpop.trf.xlu0
        %v1275 = vpop.trf.xlu0
        %v1276 = vpop.trf.xlu0
        %v1278 = vsel %vm375, %v1261, 0
        %v1281 = vsel %vm460, %v1214, 0
        %1283 = vmatprep.subr.mxu0 0.0
        %1284 = vmatpush1.msra.mxu0 %v1213
        %1285 = vmatprep.subr.mxu0 0.0
        %1286 = vmatpush1.msra.mxu0 %v1281
        %1287 = vmatprep.subr.mxu0 0.0
        %1288 = vmatpush1.msra.mxu0 0.0
        %1289 = vmatprep.subr.mxu0 0.0
        %1290 = vmatpush1.msra.mxu0 0.0
        %1291 = vmatprep.subr.mxu0 0.0
        %1292 = vmatpush1.msra.mxu0 0.0
        %1293 = vmatprep.subr.mxu0 0.0
        %1294 = vmatpush1.msra.mxu0 0.0
        %1295 = vmatprep.subr.mxu0 0.0
        %1296 = vmatpush1.msra.mxu0 0.0
        %1297 = vmatprep.subr.mxu0 0.0
        %1298 = vmatpush1.msra.mxu0 0.0
        %1299 = vmatprep.subr.mxu0 0.0
        %1300 = vmatpush1.msra.mxu0 0.0
        %1301 = vmatprep.subr.mxu0 0.0
        %1302 = vmatpush1.msra.mxu0 0.0
        %1303 = vmatprep.subr.mxu0 0.0
        %1304 = vmatpush1.msra.mxu0 0.0
        %1305 = vmatprep.subr.mxu0 0.0
        %1306 = vmatpush1.msra.mxu0 0.0
        %1307 = vmatprep.subr.mxu0 0.0
        %1308 = vmatpush1.msra.mxu0 0.0
        %1309 = vmatprep.subr.mxu0 0.0
        %1310 = vmatpush1.msra.mxu0 0.0
        %1311 = vmatprep.subr.mxu0 0.0
        %1312 = vmatpush1.msra.mxu0 0.0
        %1313 = vmatprep.subr.mxu0 0.0
        %1314 = vmatpush1.msra.mxu0 0.0
        %1315 = vmatprep.subr.mxu0 0.0
        %1316 = vmatpush1.msra.mxu0 0.0
        %1317 = vmatprep.subr.mxu0 0.0
        %1318 = vmatpush1.msra.mxu0 0.0
        %1319 = vmatprep.subr.mxu0 0.0
        %1320 = vmatpush1.msra.mxu0 0.0
        %1321 = vmatprep.subr.mxu0 0.0
        %1322 = vmatpush1.msra.mxu0 0.0
        %1323 = vmatprep.subr.mxu0 0.0
        %1324 = vmatpush1.msra.mxu0 0.0
        %1325 = vmatprep.subr.mxu0 0.0
        %1326 = vmatpush1.msra.mxu0 0.0
        %1327 = vmatprep.subr.mxu0 0.0
        %1328 = vmatpush1.msra.mxu0 0.0
        %1329 = vmatprep.subr.mxu0 0.0
        %1330 = vmatpush1.msra.mxu0 0.0
        %1331 = vmatprep.subr.mxu0 0.0
        %1332 = vmatpush1.msra.mxu0 0.0
        %1333 = vmatprep.subr.mxu0 0.0
        %1334 = vmatpush1.msra.mxu0 0.0
        %1335 = vmatprep.subr.mxu0 0.0
        %1336 = vmatpush1.msra.mxu0 0.0
        %1337 = vmatprep.subr.mxu0 0.0
        %1338 = vmatpush1.msra.mxu0 0.0
        %1339 = vmatprep.subr.mxu0 0.0
        %1340 = vmatpush1.msra.mxu0 0.0
        %1341 = vmatprep.subr.mxu0 0.0
        %1342 = vmatpush1.msra.mxu0 0.0
        %1343 = vmatprep.subr.mxu0 0.0
        %1344 = vmatpush1.msra.mxu0 0.0
        %1345 = vmatprep.subr.mxu0 0.0
        %1346 = vmatpush1.msra.mxu0 0.0
        %1347 = vmatprep.mubr.f32.mxu0 0.0
        %1348 = vmatmul.mubr.f32.gmra.mrb[0].mxu0 %v1278
        %v1349 = vpop.f32.mrb[0].mxu0
        %v1350 = vadd.f32 0.0, %v1349
        %v1351 = vpop.f32.mrb[0].mxu0
        %1352 = vdwg.mxu0
        %v1353 = vsel %vm460, %v839, 0
        %1355 = vmatprep.subr.mxu0 0.0
        %1356 = vmatpush1.msra.mxu0 %v834
        %1357 = vmatprep.subr.mxu0 0.0
        %1358 = vmatpush1.msra.mxu0 %v1353
        %1359 = vmatprep.subr.mxu0 0.0
        %1360 = vmatpush1.msra.mxu0 0.0
        %1361 = vmatprep.subr.mxu0 0.0
        %1362 = vmatpush1.msra.mxu0 0.0
        %1363 = vmatprep.subr.mxu0 0.0
        %1364 = vmatpush1.msra.mxu0 0.0
        %1365 = vmatprep.subr.mxu0 0.0
        %1366 = vmatpush1.msra.mxu0 0.0
        %1367 = vmatprep.subr.mxu0 0.0
        %1368 = vmatpush1.msra.mxu0 0.0
        %1369 = vmatprep.subr.mxu0 0.0
        %1370 = vmatpush1.msra.mxu0 0.0
        %1371 = vmatprep.subr.mxu0 0.0
        %1372 = vmatpush1.msra.mxu0 0.0
        %1373 = vmatprep.subr.mxu0 0.0
        %1374 = vmatpush1.msra.mxu0 0.0
        %1375 = vmatprep.subr.mxu0 0.0
        %1376 = vmatpush1.msra.mxu0 0.0
        %1377 = vmatprep.subr.mxu0 0.0
        %1378 = vmatpush1.msra.mxu0 0.0
        %1379 = vmatprep.subr.mxu0 0.0
        %1380 = vmatpush1.msra.mxu0 0.0
        %1381 = vmatprep.subr.mxu0 0.0
        %1382 = vmatpush1.msra.mxu0 0.0
        %1383 = vmatprep.subr.mxu0 0.0
        %1384 = vmatpush1.msra.mxu0 0.0
        %1385 = vmatprep.subr.mxu0 0.0
        %1386 = vmatpush1.msra.mxu0 0.0
        %1387 = vmatprep.subr.mxu0 0.0
        %1388 = vmatpush1.msra.mxu0 0.0
        %1389 = vmatprep.subr.mxu0 0.0
        %1390 = vmatpush1.msra.mxu0 0.0
        %1391 = vmatprep.subr.mxu0 0.0
        %1392 = vmatpush1.msra.mxu0 0.0
        %1393 = vmatprep.subr.mxu0 0.0
        %1394 = vmatpush1.msra.mxu0 0.0
        %1395 = vmatprep.subr.mxu0 0.0
        %1396 = vmatpush1.msra.mxu0 0.0
        %1397 = vmatprep.subr.mxu0 0.0
        %1398 = vmatpush1.msra.mxu0 0.0
        %1399 = vmatprep.subr.mxu0 0.0
        %1400 = vmatpush1.msra.mxu0 0.0
        %1401 = vmatprep.subr.mxu0 0.0
        %1402 = vmatpush1.msra.mxu0 0.0
        %1403 = vmatprep.subr.mxu0 0.0
        %1404 = vmatpush1.msra.mxu0 0.0
        %1405 = vmatprep.subr.mxu0 0.0
        %1406 = vmatpush1.msra.mxu0 0.0
        %1407 = vmatprep.subr.mxu0 0.0
        %1408 = vmatpush1.msra.mxu0 0.0
        %1409 = vmatprep.subr.mxu0 0.0
        %1410 = vmatpush1.msra.mxu0 0.0
        %1411 = vmatprep.subr.mxu0 0.0
        %1412 = vmatpush1.msra.mxu0 0.0
        %1413 = vmatprep.subr.mxu0 0.0
        %1414 = vmatpush1.msra.mxu0 0.0
        %1415 = vmatprep.subr.mxu0 0.0
        %1416 = vmatpush1.msra.mxu0 0.0
        %1417 = vmatprep.subr.mxu0 0.0
        %1418 = vmatpush1.msra.mxu0 0.0
        %1419 = vmatprep.mubr.f32.mxu0 0.0
        %1420 = vmatmul.mubr.f32.gmra.mrb[0].mxu0 %v1278
        %v1421 = vpop.f32.mrb[0].mxu0
        %v1422 = vadd.f32 0.0, %v1421
        %v1423 = vpop.f32.mrb[0].mxu0
        %1424 = vdwg.mxu0
        %v1426 = vsel %vm375, %v1422, 0
        %v1428 = vsel %vm460, %v1242, 0
        %1430 = vmatprep.subr.mxu0 0.0
        %1431 = vmatpush1.msra.mxu0 %v1240
        %1432 = vmatprep.subr.mxu0 0.0
        %1433 = vmatpush1.msra.mxu0 %v1428
        %1434 = vmatprep.subr.mxu0 0.0
        %1435 = vmatpush1.msra.mxu0 0.0
        %1436 = vmatprep.subr.mxu0 0.0
        %1437 = vmatpush1.msra.mxu0 0.0
        %1438 = vmatprep.subr.mxu0 0.0
        %1439 = vmatpush1.msra.mxu0 0.0
        %1440 = vmatprep.subr.mxu0 0.0
        %1441 = vmatpush1.msra.mxu0 0.0
        %1442 = vmatprep.subr.mxu0 0.0
        %1443 = vmatpush1.msra.mxu0 0.0
        %1444 = vmatprep.subr.mxu0 0.0
        %1445 = vmatpush1.msra.mxu0 0.0
        %1446 = vmatprep.subr.mxu0 0.0
        %1447 = vmatpush1.msra.mxu0 0.0
        %1448 = vmatprep.subr.mxu0 0.0
        %1449 = vmatpush1.msra.mxu0 0.0
        %1450 = vmatprep.subr.mxu0 0.0
        %1451 = vmatpush1.msra.mxu0 0.0
        %1452 = vmatprep.subr.mxu0 0.0
        %1453 = vmatpush1.msra.mxu0 0.0
        %1454 = vmatprep.subr.mxu0 0.0
        %1455 = vmatpush1.msra.mxu0 0.0
        %1456 = vmatprep.subr.mxu0 0.0
        %1457 = vmatpush1.msra.mxu0 0.0
        %1458 = vmatprep.subr.mxu0 0.0
        %1459 = vmatpush1.msra.mxu0 0.0
        %1460 = vmatprep.subr.mxu0 0.0
        %1461 = vmatpush1.msra.mxu0 0.0
        %1462 = vmatprep.subr.mxu0 0.0
        %1463 = vmatpush1.msra.mxu0 0.0
        %1464 = vmatprep.subr.mxu0 0.0
        %1465 = vmatpush1.msra.mxu0 0.0
        %1466 = vmatprep.subr.mxu0 0.0
        %1467 = vmatpush1.msra.mxu0 0.0
        %1468 = vmatprep.subr.mxu0 0.0
        %1469 = vmatpush1.msra.mxu0 0.0
        %1470 = vmatprep.subr.mxu0 0.0
        %1471 = vmatpush1.msra.mxu0 0.0
        %1472 = vmatprep.subr.mxu0 0.0
        %1473 = vmatpush1.msra.mxu0 0.0
        %1474 = vmatprep.subr.mxu0 0.0
        %1475 = vmatpush1.msra.mxu0 0.0
        %1476 = vmatprep.subr.mxu0 0.0
        %1477 = vmatpush1.msra.mxu0 0.0
        %1478 = vmatprep.subr.mxu0 0.0
        %1479 = vmatpush1.msra.mxu0 0.0
        %1480 = vmatprep.subr.mxu0 0.0
        %1481 = vmatpush1.msra.mxu0 0.0
        %1482 = vmatprep.subr.mxu0 0.0
        %1483 = vmatpush1.msra.mxu0 0.0
        %1484 = vmatprep.subr.mxu0 0.0
        %1485 = vmatpush1.msra.mxu0 0.0
        %1486 = vmatprep.subr.mxu0 0.0
        %1487 = vmatpush1.msra.mxu0 0.0
        %1488 = vmatprep.subr.mxu0 0.0
        %1489 = vmatpush1.msra.mxu0 0.0
        %1490 = vmatprep.subr.mxu0 0.0
        %1491 = vmatpush1.msra.mxu0 0.0
        %1492 = vmatprep.subr.mxu0 0.0
        %1493 = vmatpush1.msra.mxu0 0.0
        %1494 = vmatprep.mubr.f32.mxu0 0.0
        %1495 = vmatmul.mubr.f32.gmra.mrb[0].mxu0 %v1426
        %v1496 = vpop.f32.mrb[0].mxu0
        %v1497 = vadd.f32 0.0, %v1496
        %v1498 = vpop.f32.mrb[0].mxu0
        %1499 = vdwg.mxu0
        %v1501 = vsel %vm1016, %v1350, 0
        %v1504 = vsel %vm1120, %v216, 0
        %1506 = vmatprep.subr.mxu0 0.0
        %1507 = vmatpush1.msra.mxu0 %v213
        %1508 = vmatprep.subr.mxu0 0.0
        %1509 = vmatpush1.msra.mxu0 %v214
        %1510 = vmatprep.subr.mxu0 0.0
        %1511 = vmatpush1.msra.mxu0 %v215
        %1512 = vmatprep.subr.mxu0 0.0
        %1513 = vmatpush1.msra.mxu0 %v1504
        %1514 = vmatprep.subr.mxu0 0.0
        %1515 = vmatpush1.msra.mxu0 0.0
        %1516 = vmatprep.subr.mxu0 0.0
        %1517 = vmatpush1.msra.mxu0 0.0
        %1518 = vmatprep.subr.mxu0 0.0
        %1519 = vmatpush1.msra.mxu0 0.0
        %1520 = vmatprep.subr.mxu0 0.0
        %1521 = vmatpush1.msra.mxu0 0.0
        %1522 = vmatprep.subr.mxu0 0.0
        %1523 = vmatpush1.msra.mxu0 0.0
        %1524 = vmatprep.subr.mxu0 0.0
        %1525 = vmatpush1.msra.mxu0 0.0
        %1526 = vmatprep.subr.mxu0 0.0
        %1527 = vmatpush1.msra.mxu0 0.0
        %1528 = vmatprep.subr.mxu0 0.0
        %1529 = vmatpush1.msra.mxu0 0.0
        %1530 = vmatprep.subr.mxu0 0.0
        %1531 = vmatpush1.msra.mxu0 0.0
        %1532 = vmatprep.subr.mxu0 0.0
        %1533 = vmatpush1.msra.mxu0 0.0
        %1534 = vmatprep.subr.mxu0 0.0
        %1535 = vmatpush1.msra.mxu0 0.0
        %1536 = vmatprep.subr.mxu0 0.0
        %1537 = vmatpush1.msra.mxu0 0.0
        %1538 = vmatprep.subr.mxu0 0.0
        %1539 = vmatpush1.msra.mxu0 0.0
        %1540 = vmatprep.subr.mxu0 0.0
        %1541 = vmatpush1.msra.mxu0 0.0
        %1542 = vmatprep.subr.mxu0 0.0
        %1543 = vmatpush1.msra.mxu0 0.0
        %1544 = vmatprep.subr.mxu0 0.0
        %1545 = vmatpush1.msra.mxu0 0.0
        %1546 = vmatprep.subr.mxu0 0.0
        %1547 = vmatpush1.msra.mxu0 0.0
        %1548 = vmatprep.subr.mxu0 0.0
        %1549 = vmatpush1.msra.mxu0 0.0
        %1550 = vmatprep.subr.mxu0 0.0
        %1551 = vmatpush1.msra.mxu0 0.0
        %1552 = vmatprep.subr.mxu0 0.0
        %1553 = vmatpush1.msra.mxu0 0.0
        %1554 = vmatprep.subr.mxu0 0.0
        %1555 = vmatpush1.msra.mxu0 0.0
        %1556 = vmatprep.subr.mxu0 0.0
        %1557 = vmatpush1.msra.mxu0 0.0
        %1558 = vmatprep.subr.mxu0 0.0
        %1559 = vmatpush1.msra.mxu0 0.0
        %1560 = vmatprep.subr.mxu0 0.0
        %1561 = vmatpush1.msra.mxu0 0.0
        %1562 = vmatprep.subr.mxu0 0.0
        %1563 = vmatpush1.msra.mxu0 0.0
        %1564 = vmatprep.subr.mxu0 0.0
        %1565 = vmatpush1.msra.mxu0 0.0
        %1566 = vmatprep.subr.mxu0 0.0
        %1567 = vmatpush1.msra.mxu0 0.0
        %1568 = vmatprep.subr.mxu0 0.0
        %1569 = vmatpush1.msra.mxu0 0.0
        %1570 = vmatprep.mubr.f32.mxu0 0.0
        %1571 = vmatmul.mubr.f32.gmra.mrb[0].mxu0 %v1501
        %v1572 = vpop.f32.mrb[0].mxu0
        %v1573 = vadd.f32 %v217, %v1572
        %v1574 = vpop.f32.mrb[0].mxu0
        %1575 = vdwg.mxu0
        %1576 = vst [vmem:[%s189] sm:$0xff] 0.0
        %vm1577 = vcmask 221184
        %1578 = vst.msk [vmem:[%s189] sm:$0x1] %vm1577, %v1350
        %vm1579 = vcmask 0
        %1580 = vst.msk [vmem:[%s189 + $0x1] sm:$0x1] %vm1579, %v1497
        %vm1581 = vcmask 8192
        %1582 = vst.msk [vmem:[%s189 + $0x2] sm:$0x1] %vm1581, %v1573
        %s1583 = sand.u32 %s99, 1
        %s1584 = scalar_lea.sflag [#allocation4], %s1583
        %s1585 = sand.u32 %s99, 1
        %s1586 = smul.addr %s1585, 8
        %s1587 = scalar_lea.vmem [#allocation5], %s1586
        // Predicated region
        $region37: #{tpu_custom_call.1} parent=31 // pred_check
          %p1588 = pneg %p109
        $region38: #{tpu_custom_call.1} parent=31 // pred_check_branch
          %1590 = sbr.rel (%p1588) target = $region40
        $region39: #{tpu_custom_call.1} parent=31 // pred_region
          %s1592 = ssub.s32 128, 128
          %1593 = vsyncadd %s1584, %s1592
          %s1594 = smul.addr %s18, 128
          %s1595 = scalar_lea.hbm %s3, %s1594
          %s1597 = sshll.u32 %s1587, 4
          %s1598 = int_to_ptr.vmem [resolvable:$true] %s1597
          %1600 = dma.vmem_to_hbm [thread:$0]  %s1598, 128, %s1595, %s1584
        $region40: #{tpu_custom_call.1} parent=31 // pred_fallthru
          _
      $region32: #{tpu_custom_call.1} parent=5 // pred_fallthru
        _
      %p1601 = scmp.le.s32.totalorder 2, %s13
      // Predicated region
      $region41: #{tpu_custom_call.1} parent=5 // pred_check
        %p1602 = pneg %p1601
      $region42: #{tpu_custom_call.1} parent=5 // pred_check_branch
        %1604 = sbr.rel (%p1602) target = $region44
      $region43: #{tpu_custom_call.1} parent=5 // pred_region
        %s1605 = ssub.s32 %s13, 2
        // Predicated region
        $region45: #{tpu_custom_call.1} parent=43 // pred_check
          %p1606 = pneg %p115
        $region46: #{tpu_custom_call.1} parent=43 // pred_check_branch
          %1608 = sbr.rel (%p1606) target = $region48
        $region47: #{tpu_custom_call.1} parent=43 // pred_region
          %s1609 = sand.u32 %s100, 1
          %s1610 = scalar_lea.sflag [#allocation4], %s1609
          %s1611 = sand.u32 %s100, 1
          %s1612 = smul.addr %s1611, 8
          %s1613 = scalar_lea.vmem [#allocation5], %s1612
          %1614 = dma.done %s1610, 128
        $region48: #{tpu_custom_call.1} parent=43 // pred_fallthru
          _
      $region44: #{tpu_custom_call.1} parent=5 // pred_fallthru
        _
    $region6: #{tpu_custom_call.1} parent=1 // loop_footer
      %s17 = sadd.s32 1, %s13
    $region7: #{tpu_custom_call.1} parent=1 // loop_footer_branch
      %12 = sbr.rel target = $region3
    $region8: #{tpu_custom_call.1} parent=1 // loop_exit
      _
    %1615 = vsyncpa [#allocation3], 1
    %s1616 = scalar_lea.sflag [#allocation3], 1
    %1617 = vsyncpa %s1616, 1
    %1618 = vsyncpa [#allocation4], 1
    %s1619 = scalar_lea.sflag [#allocation4], 1
    %1620 = vsyncpa %s1619, 1

</llo_original>
